<compile_context>
chip_gen: v7x
topology: tpu7x:2x2x1
jax: 0.10.0
libtpu: 0.0.40
codegen_flags: <defaults>
</compile_context>

<pallas_src>
import jax
import jax.numpy as jnp
from jax.experimental import pallas as pl
from jax.experimental.pallas import tpu as pltpu


def _round_up(x, m):
    return (x + m - 1) // m * m


def conf_branch_kernel(patches_ref, wconv_ref, bconv_ref, whead_ref, bhead_ref,
                       out_ref, acc_ref):
    # patches_ref: (TN, TH, K) bf16  -- TH spatial positions of TN samples
    # wconv_ref:   (K, FP)     bf16
    # bconv_ref:   (1, FP)     f32
    # whead_ref:   (FP, HP)    f32   (fc + confidence fused, pre-scaled by 1/HW)
    # bhead_ref:   (1, HP)     f32
    # out_ref:     (TN, HP)    f32   (lane-dense fused head output)
    # acc_ref:     (TN, FP)    f32   (pooled-feature accumulator)
    j = pl.program_id(1)

    @pl.when(j == 0)
    def _init():
        acc_ref[...] = jnp.zeros_like(acc_ref)

    tn, th, k = patches_ref.shape
    lhs = patches_ref[...].reshape(tn * th, k)                    # fat 2-D GEMM
    h = jnp.dot(lhs, wconv_ref[...], preferred_element_type=jnp.float32)
    h = jnp.maximum(h + bconv_ref[...], 0.0)                      # bias + ReLU
    acc_ref[...] += h.reshape(tn, th, -1).sum(axis=1)             # partial pool

    @pl.when(j == pl.num_programs(1) - 1)
    def _finalize():
        feature_sum = acc_ref[...]                                # (TN, FP)
        heads = jnp.dot(feature_sum, whead_ref[...],
                        preferred_element_type=jnp.float32) + bhead_ref[...]
        out_ref[...] = heads.astype(out_ref.dtype)


def _im2col_3x3(x_nhwc):
    """3x3, stride 1, padding 1 patches, ordered (kh, kw, c) -> [N, HW, 9*C]."""
    N, H, W, C = x_nhwc.shape
    xp = jnp.pad(x_nhwc, ((0, 0), (1, 1), (1, 1), (0, 0)))
    slices = [xp[:, i:i + H, j:j + W, :] for i in range(3) for j in range(3)]
    patches = jnp.concatenate(slices, axis=-1)        # [N, H, W, 9*C]
    return patches.reshape(N, H * W, 9 * C)


def conf_branch_net(x_nchw, params, return_confidence=False):
    wconv, bconv, wfc, bfc, wconf, bconf = params
    N, C, H, W = x_nchw.shape
    HW = H * W
    K = 9 * C
    F = wconv.shape[1]
    num_classes = wfc.shape[1]

    FP = _round_up(F, 128)                 # lane-padded feature width
    HP = _round_up(num_classes + 1, 128)   # lane-dense fused head width

    # im2col stays in the wrapper (layout plumbing handled by XLA).
    # TODO(synk): for large backbones, build the 3x3 patches in-kernel from a
    # padded NHWC tile (9 accumulating taps) to cut HBM read bytes ~9x; at
    # C_in=4 the in-kernel shifted-slice layout is lane-hostile, so it is
    # skipped here.
    x = jnp.transpose(x_nchw, (0, 2, 3, 1))            # NCHW -> NHWC
    patches = _im2col_3x3(x).astype(jnp.bfloat16)      # [N, HW, K] bf16

    # Tile sizes.
    TN = 8                                              # sublane-aligned batch tile
    NP = _round_up(N, TN)
    if NP != N:
        patches = jnp.pad(patches, ((0, NP - N), (0, 0), (0, 0)))
    TH = 128 if HW % 128 == 0 else HW                   # HW reduction tile
    assert HW % TH == 0

    # Conv weight / bias, F padded to 128 lanes; GEMM operands in bf16.
    wconv_p = jnp.zeros((K, FP), jnp.bfloat16).at[:, :F].set(
        wconv.astype(jnp.bfloat16))
    bconv_p = jnp.zeros((1, FP), jnp.float32).at[:, :F].set(bconv.reshape(1, F))

    # Fused heads: columns [0:num_classes] = fc, column num_classes = confidence.
    # 1/HW of the global average pool is folded into the weights.
    whead = jnp.zeros((FP, HP), jnp.float32)
    whead = whead.at[:F, :num_classes].set(wfc / HW)
    whead = whead.at[:F, num_classes].set(wconf[:, 0] / HW)
    bhead = jnp.zeros((1, HP), jnp.float32)
    bhead = bhead.at[:, :num_classes].set(bfc.reshape(1, num_classes))
    bhead = bhead.at[:, num_classes].set(bconf.reshape(()))

    grid = (NP // TN, HW // TH)

    flops = 2 * NP * HW * K * FP + 2 * NP * FP * HP
    bytes_accessed = (patches.size * 2 + wconv_p.size * 2
                      + (bconv_p.size + whead.size + bhead.size) * 4
                      + NP * HP * 4)

    out = pl.pallas_call(
        conf_branch_kernel,
        out_shape=jax.ShapeDtypeStruct((NP, HP), jnp.float32),
        grid_spec=pltpu.PrefetchScalarGridSpec(
            num_scalar_prefetch=0,
            grid=grid,
            in_specs=[
                pl.BlockSpec((TN, TH, K), lambda n, j: (n, j, 0)),   # patches
                pl.BlockSpec((K, FP), lambda n, j: (0, 0)),          # conv W
                pl.BlockSpec((1, FP), lambda n, j: (0, 0)),          # conv b
                pl.BlockSpec((FP, HP), lambda n, j: (0, 0)),         # head W
                pl.BlockSpec((1, HP), lambda n, j: (0, 0)),          # head b
            ],
            out_specs=pl.BlockSpec((TN, HP), lambda n, j: (n, 0)),
            scratch_shapes=[pltpu.VMEM((TN, FP), jnp.float32)],
        ),
        compiler_params=pltpu.CompilerParams(
            dimension_semantics=("parallel", "arbitrary"),
            vmem_limit_bytes=32 * 1024 * 1024,
        ),
        cost_estimate=pl.CostEstimate(flops=flops, transcendentals=0,
                                      bytes_accessed=bytes_accessed),
    )(patches, wconv_p, bconv_p, whead, bhead)

    pred = out[:N, :num_classes]
    conf = out[:N, num_classes:num_classes + 1]
    if return_confidence:
        return pred, conf
    return pred


def init_params(key, c_in, feature_size, num_classes):
    k = jax.random.split(key, 6)
    K = 9 * c_in
    wconv = jax.random.normal(k[0], (K, feature_size), jnp.float32) * 0.1
    bconv = jax.random.normal(k[1], (1, feature_size), jnp.float32) * 0.1
    wfc = jax.random.normal(k[2], (feature_size, num_classes), jnp.float32) * 0.1
    bfc = jax.random.normal(k[3], (1, num_classes), jnp.float32) * 0.1
    wconf = jax.random.normal(k[4], (feature_size, 1), jnp.float32) * 0.1
    bconf = jax.random.normal(k[5], (1, 1), jnp.float32) * 0.1
    return wconv, bconv, wfc, bfc, wconf, bconf


def _reference(x_nchw, params):
    # Plain-JAX reference with matching numerics (conv operands rounded to
    # bf16, accumulation in f32) for a tight correctness check.
    wconv, bconv, wfc, bfc, wconf, bconf = params
    x = jnp.transpose(x_nchw, (0, 2, 3, 1))
    patches = _im2col_3x3(x)
    p_bf = patches.astype(jnp.bfloat16).astype(jnp.float32)
    w_bf = wconv.astype(jnp.bfloat16).astype(jnp.float32)
    h = jnp.einsum('nhk,kf->nhf', p_bf, w_bf,
                   precision=jax.lax.Precision.HIGHEST)
    h = jnp.maximum(h + bconv, 0.0)
    feature = jnp.mean(h, axis=1)
    pred = jnp.dot(feature, wfc, precision=jax.lax.Precision.HIGHEST) + bfc
    conf = jnp.dot(feature, wconf, precision=jax.lax.Precision.HIGHEST) + bconf
    return pred, conf


if __name__ == "__main__":
    key = jax.random.PRNGKey(0)
    kx, kp = jax.random.split(key)

    N, C, H, W = 2, 4, 16, 16
    feature_size, num_classes = 32, 10

    x = jax.random.normal(kx, (N, C, H, W), jnp.float32)   # NCHW like PyTorch
    params = init_params(kp, C, feature_size, num_classes)

    pred, conf = conf_branch_net(x, params, return_confidence=True)
    pred = jax.block_until_ready(pred)
    conf = jax.block_until_ready(conf)

    pred_ref, conf_ref = _reference(x, params)
    assert pred.shape == (N, num_classes) and conf.shape == (N, 1)
    assert jnp.allclose(pred, pred_ref, atol=1e-2, rtol=1e-2)
    assert jnp.allclose(conf, conf_ref, atol=1e-2, rtol=1e-2)

    print("KERNEL_OK")
</pallas_src>

<mosaic_0001>
module attributes {stable_mosaic.version = 11 : i64} {
  func.func @conf_branch_kernel(%arg0: i32, %arg1: i32, %arg2: memref<8x128x36xbf16, #tpu.memory_space<vmem>>, %arg3: memref<36x128xbf16, #tpu.memory_space<vmem>>, %arg4: memref<1x128xf32, #tpu.memory_space<vmem>>, %arg5: memref<128x128xf32, #tpu.memory_space<vmem>>, %arg6: memref<1x128xf32, #tpu.memory_space<vmem>>, %arg7: memref<8x128xf32, #tpu.memory_space<vmem>>, %arg8: memref<8x128xf32, #tpu.memory_space<vmem>>) attributes {dimension_semantics = [#tpu.dimension_semantics<parallel>, #tpu.dimension_semantics<arbitrary>], iteration_bounds = array<i64: 1, 2>, scalar_prefetch = 0 : i64, scratch_operands = 1 : i64, tpu.core_type = #tpu.core_type<tc>, window_params = [{transform_indices = @transform_0, window_bounds = array<i64: 8, 128, 36>}, {pipeline_mode = #tpu.pipeline_mode<synchronous>, transform_indices = @transform_1, window_bounds = array<i64: 36, 128>}, {pipeline_mode = #tpu.pipeline_mode<synchronous>, transform_indices = @transform_2, window_bounds = array<i64: 1, 128>}, {pipeline_mode = #tpu.pipeline_mode<synchronous>, transform_indices = @transform_3, window_bounds = array<i64: 128, 128>}, {pipeline_mode = #tpu.pipeline_mode<synchronous>, transform_indices = @transform_4, window_bounds = array<i64: 1, 128>}, {transform_indices = @transform_5, window_bounds = array<i64: 8, 128>}]} {
    %c0_i32 = arith.constant 0 : i32
    %0 = arith.cmpi eq, %arg1, %c0_i32 : i32
    %1 = arith.extui %0 : i1 to i32
    %c0_i32_0 = arith.constant 0 : i32
    %2 = arith.cmpi ne, %1, %c0_i32_0 : i32
    scf.if %2 {
      %cst_14 = arith.constant 0.000000e+00 : f32
      %20 = vector.broadcast %cst_14 : f32 to vector<8x128xf32>
      %c0_15 = arith.constant 0 : index
      %c0_16 = arith.constant 0 : index
      %21 = vector.load %arg8[%c0_15, %c0_16] : memref<8x128xf32, #tpu.memory_space<vmem>>, vector<8x128xf32>
      tpu.vector_store %arg8[%c0_15, %c0_16], %20 {strides = array<i32>} : memref<8x128xf32, #tpu.memory_space<vmem>>, vector<8x128xf32>,
    } else {
    }
    %c0 = arith.constant 0 : index
    %c0_1 = arith.constant 0 : index
    %c0_2 = arith.constant 0 : index
    %3 = vector.load %arg2[%c0, %c0_1, %c0_2] : memref<8x128x36xbf16, #tpu.memory_space<vmem>>, vector<8x128x36xbf16>
    %4 = vector.shape_cast %3 : vector<8x128x36xbf16> to vector<1024x36xbf16>
    %c0_3 = arith.constant 0 : index
    %c0_4 = arith.constant 0 : index
    %5 = vector.load %arg3[%c0_3, %c0_4] : memref<36x128xbf16, #tpu.memory_space<vmem>>, vector<36x128xbf16>
    %cst = arith.constant dense<0.000000e+00> : vector<1024x128xf32>
    %6 = tpu.matmul %4, %5, %cst {dimension_numbers = #tpu.dot_dimension_numbers<[1], [0], [0], [1], [0, 0, 1, 1], [], []>} : vector<1024x36xbf16>, vector<36x128xbf16>, vector<1024x128xf32> -> vector<1024x128xf32>
    %c0_5 = arith.constant 0 : index
    %c0_6 = arith.constant 0 : index
    %7 = vector.load %arg4[%c0_5, %c0_6] : memref<1x128xf32, #tpu.memory_space<vmem>>, vector<1x128xf32>
    %8 = vector.broadcast %7 : vector<1x128xf32> to vector<1024x128xf32>
    %9 = arith.addf %6, %8 : vector<1024x128xf32>
    %cst_7 = arith.constant 0.000000e+00 : f32
    %10 = vector.broadcast %cst_7 : f32 to vector<1024x128xf32>
    %11 = arith.maximumf %9, %10 : vector<1024x128xf32>
    %c0_8 = arith.constant 0 : index
    %c0_9 = arith.constant 0 : index
    %12 = vector.load %arg8[%c0_8, %c0_9] : memref<8x128xf32, #tpu.memory_space<vmem>>, vector<8x128xf32>
    %13 = vector.shape_cast %11 : vector<1024x128xf32> to vector<8x128x128xf32>
    %cst_10 = arith.constant dense<0.000000e+00> : vector<8x128xf32>
    %14 = vector.multi_reduction <add>, %13, %cst_10 [1] : vector<8x128x128xf32> to vector<8x128xf32>
    %15 = arith.addf %12, %14 : vector<8x128xf32>
    %c0_11 = arith.constant 0 : index
    %c0_12 = arith.constant 0 : index
    %16 = vector.load %arg8[%c0_11, %c0_12] : memref<8x128xf32, #tpu.memory_space<vmem>>, vector<8x128xf32>
    tpu.vector_store %arg8[%c0_11, %c0_12], %15 {strides = array<i32>} : memref<8x128xf32, #tpu.memory_space<vmem>>, vector<8x128xf32>,
    %c1_i32 = arith.constant 1 : i32
    %17 = arith.cmpi eq, %arg1, %c1_i32 : i32
    %18 = arith.extui %17 : i1 to i32
    %c0_i32_13 = arith.constant 0 : i32
    %19 = arith.cmpi ne, %18, %c0_i32_13 : i32
    scf.if %19 {
      %c0_14 = arith.constant 0 : index
      %c0_15 = arith.constant 0 : index
      %20 = vector.load %arg8[%c0_14, %c0_15] : memref<8x128xf32, #tpu.memory_space<vmem>>, vector<8x128xf32>
      %c0_16 = arith.constant 0 : index
      %c0_17 = arith.constant 0 : index
      %21 = vector.load %arg5[%c0_16, %c0_17] : memref<128x128xf32, #tpu.memory_space<vmem>>, vector<128x128xf32>
      %cst_18 = arith.constant dense<0.000000e+00> : vector<8x128xf32>
      %22 = tpu.matmul %20, %21, %cst_18 {dimension_numbers = #tpu.dot_dimension_numbers<[1], [0], [0], [1], [0, 0, 1, 1], [], []>} : vector<8x128xf32>, vector<128x128xf32>, vector<8x128xf32> -> vector<8x128xf32>
      %c0_19 = arith.constant 0 : index
      %c0_20 = arith.constant 0 : index
      %23 = vector.load %arg6[%c0_19, %c0_20] : memref<1x128xf32, #tpu.memory_space<vmem>>, vector<1x128xf32>
      %24 = vector.broadcast %23 : vector<1x128xf32> to vector<8x128xf32>
      %25 = arith.addf %22, %24 : vector<8x128xf32>
      %c0_21 = arith.constant 0 : index
      %c0_22 = arith.constant 0 : index
      %26 = vector.load %arg7[%c0_21, %c0_22] : memref<8x128xf32, #tpu.memory_space<vmem>>, vector<8x128xf32>
      tpu.vector_store %arg7[%c0_21, %c0_22], %25 {strides = array<i32>} : memref<8x128xf32, #tpu.memory_space<vmem>>, vector<8x128xf32>,
    } else {
    }
    return
  }
  func.func @transform_0(%arg0: i32, %arg1: i32) -> (i32, i32, i32) {
    %c0_i32 = arith.constant 0 : i32
    %c0_i32_0 = arith.constant 0 : i32
    return %arg0, %arg1, %c0_i32 : i32, i32, i32
  }
  func.func @transform_1(%arg0: i32, %arg1: i32) -> (i32, i32) {
    %c0_i32 = arith.constant 0 : i32
    %c0_i32_0 = arith.constant 0 : i32
    %c0_i32_1 = arith.constant 0 : i32
    return %c0_i32, %c0_i32_0 : i32, i32
  }
  func.func @transform_2(%arg0: i32, %arg1: i32) -> (i32, i32) {
    %c0_i32 = arith.constant 0 : i32
    %c0_i32_0 = arith.constant 0 : i32
    %c0_i32_1 = arith.constant 0 : i32
    return %c0_i32, %c0_i32_0 : i32, i32
  }
  func.func @transform_3(%arg0: i32, %arg1: i32) -> (i32, i32) {
    %c0_i32 = arith.constant 0 : i32
    %c0_i32_0 = arith.constant 0 : i32
    %c0_i32_1 = arith.constant 0 : i32
    return %c0_i32, %c0_i32_0 : i32, i32
  }
  func.func @transform_4(%arg0: i32, %arg1: i32) -> (i32, i32) {
    %c0_i32 = arith.constant 0 : i32
    %c0_i32_0 = arith.constant 0 : i32
    %c0_i32_1 = arith.constant 0 : i32
    return %c0_i32, %c0_i32_0 : i32, i32
  }
  func.func @transform_5(%arg0: i32, %arg1: i32) -> (i32, i32) {
    %c0_i32 = arith.constant 0 : i32
    %c0_i32_0 = arith.constant 0 : i32
    return %arg0, %c0_i32 : i32, i32
  }
}

</mosaic_0001>

<llo_original>
// kernel: tpu_custom_call.1
$region0: #{tpu_custom_call.1}
  #allocation0 [shape = 'u32[]', space=smem, size = 0x4, offset = 0x4, fixed_abs, tag = 'smem constant byte address 0x4 - core index']
  #allocation1 [shape = 'u32[144,128]{1,0:T(1,128)}', space=vmem, size = 0x12000, scoped, tag = 'internal scratch']
  #allocation2 [shape = 'f32[8,128]{1,0:T(8,128)}', space=vmem, size = 0x1000, scoped, tag = 'scratch operand']
  %s0 = inlined_call_operand.vmem [shape: bf16[8,256,36], index: 0, kind: input, shape index: {}]
  %s1 = inlined_call_operand.vmem [shape: bf16[36,128], index: 1, kind: input, shape index: {}]
  %s2 = inlined_call_operand.vmem [shape: f32[1,128], index: 2, kind: input, shape index: {}]
  %s3 = inlined_call_operand.vmem [shape: f32[128,128], index: 3, kind: input, shape index: {}]
  %s4 = inlined_call_operand.vmem [shape: f32[1,128], index: 4, kind: input, shape index: {}]
  %s5 = inlined_call_operand.hbm [shape: f32[8,128], index: 5, kind: output, shape index: {}]
  %s6 = sld [smem:[#allocation0]]
  $region102: #{tpu_custom_call.1} parent=0
    _
  %s8 = ssub.s32 1, %s6
  %s9 = scalar_select 0, %s8, %s6
  $region1: #{tpu_custom_call.1} parent=0
    #allocation3 [shape = 'u8[524288]{0}', space=vmem, size = 0x80000, scoped, tag = 'input window, operand 0']
    #allocation4 [shape = 'u8[4096]{0}', space=vmem, size = 0x1000, scoped, tag = 'output window, operand 0, single buffered']
    #allocation5 [shape = 's32[2]{0}', space=sflag, size = 0x8, scoped, tag = 'scoped memory for tpu_custom_call.1']
    %10 = vsyncpa [#allocation5], 0
    loop: start=0, step=1, limit=4
    $region2: #{tpu_custom_call.1} parent=1 // loop_pre_header
      _
    $region3: #{tpu_custom_call.1} parent=1 // loop_header
      %s12 = sphi 0, %s16
      %p13 = scmp.ge.s32.totalorder %s12, 4
      %s19 = sphi 0, %s31
      %s20 = sphi 0, %s27
      %s21 = sphi 0, %s19
      %s22 = sphi 0, %s20
      %s23 = sphi 0, %s21
      %s24 = sphi 0, %s22
      %s36 = sphi 0, %s38
      %s39 = sphi 0, %s36
      %s40 = sphi 0, %s39
      %s56 = sphi 0, %s40
      %s60 = sphi 0, %s60
      %s62 = sphi 0, %s60
      %s63 = sphi 0, %s62
      %s77 = sphi 0, %s63
      %s81 = sphi 0, %s81
      %s83 = sphi 0, %s81
      %s84 = sphi 0, %s83
      %s98 = sphi 0, %s84
      %s102 = sphi 0, %s102
      %s104 = sphi 0, %s102
      %s105 = sphi 0, %s104
      %s119 = sphi 0, %s105
      %s123 = sphi 0, %s123
      %s125 = sphi 0, %s123
      %s126 = sphi 0, %s125
      %s140 = sphi 0, %s126
      %s146 = sphi 0, %s148
      %s149 = sphi 0, %s146
      %s150 = sphi 0, %s149
      %s166 = sphi 0, %s150
    $region4: #{tpu_custom_call.1} parent=1 // loop_header_branch
      %15 = sbr.rel (%p13) target = $region8
    $region5: #{tpu_custom_call.1} parent=1 // loop_body
      %s17 = ssub.s32 %s12, 1
      %s18 = ssub.s32 %s12, 2
      %s25 = sadd.s32 1, %s20
      %p26 = scmp.ge.s32.totalorder %s25, 2
      %s27 = scalar_select %p26, 0, %s25
      %s28 = sadd.s32 1, %s19
      %s29 = scalar_select %p26, %s28, %s19
      %p30 = scmp.ge.s32.totalorder %s29, 1
      %s31 = scalar_select %p30, 0, %s29
      %s32 = ssub.s32 %s19, %s31
      %s33 = ssub.s32 %s20, %s27
      %s34 = sor.u32 %s32, %s33
      %p35 = scmp.eq.s32.totalorder %s34, 0
      %s37 = sadd.s32 %s36, 1
      %s38 = scalar_select %p35, %s36, %s37
      %p41 = pneg %p35
      %p42 = scmp.eq.s32.totalorder %s12, 1
      %p43 = por %p41, %p42
      %p44 = scmp.ne.s32.totalorder %s36, %s39
      %p45 = scmp.eq.s32.totalorder %s12, 0
      %p46 = por %p44, %p45
      %p47 = scmp.ne.s32.totalorder %s36, %s39
      %p48 = scmp.eq.s32.totalorder %s17, 1
      %p49 = por %p47, %p48
      %p50 = scmp.ne.s32.totalorder %s39, %s40
      %p51 = scmp.eq.s32.totalorder %s17, 0
      %p52 = por %p50, %p51
      %p53 = scmp.ne.s32.totalorder %s39, %s40
      %p54 = scmp.eq.s32.totalorder %s18, 1
      %p55 = por %p53, %p54
      %p57 = scmp.ne.s32.totalorder %s40, %s56
      %p58 = scmp.eq.s32.totalorder %s18, 0
      %p59 = por %p57, %p58
      %s61 = sadd.s32 %s60, 1
      %p64 = scmp.eq.s32.totalorder %s12, 1
      %p65 = scmp.ne.s32.totalorder %s60, %s62
      %p66 = scmp.eq.s32.totalorder %s12, 0
      %p67 = por %p65, %p66
      %p68 = scmp.ne.s32.totalorder %s60, %s62
      %p69 = scmp.eq.s32.totalorder %s17, 1
      %p70 = por %p68, %p69
      %p71 = scmp.ne.s32.totalorder %s62, %s63
      %p72 = scmp.eq.s32.totalorder %s17, 0
      %p73 = por %p71, %p72
      %p74 = scmp.ne.s32.totalorder %s62, %s63
      %p75 = scmp.eq.s32.totalorder %s18, 1
      %p76 = por %p74, %p75
      %p78 = scmp.ne.s32.totalorder %s63, %s77
      %p79 = scmp.eq.s32.totalorder %s18, 0
      %p80 = por %p78, %p79
      %s82 = sadd.s32 %s81, 1
      %p85 = scmp.eq.s32.totalorder %s12, 1
      %p86 = scmp.ne.s32.totalorder %s81, %s83
      %p87 = scmp.eq.s32.totalorder %s12, 0
      %p88 = por %p86, %p87
      %p89 = scmp.ne.s32.totalorder %s81, %s83
      %p90 = scmp.eq.s32.totalorder %s17, 1
      %p91 = por %p89, %p90
      %p92 = scmp.ne.s32.totalorder %s83, %s84
      %p93 = scmp.eq.s32.totalorder %s17, 0
      %p94 = por %p92, %p93
      %p95 = scmp.ne.s32.totalorder %s83, %s84
      %p96 = scmp.eq.s32.totalorder %s18, 1
      %p97 = por %p95, %p96
      %p99 = scmp.ne.s32.totalorder %s84, %s98
      %p100 = scmp.eq.s32.totalorder %s18, 0
      %p101 = por %p99, %p100
      %s103 = sadd.s32 %s102, 1
      %p106 = scmp.eq.s32.totalorder %s12, 1
      %p107 = scmp.ne.s32.totalorder %s102, %s104
      %p108 = scmp.eq.s32.totalorder %s12, 0
      %p109 = por %p107, %p108
      %p110 = scmp.ne.s32.totalorder %s102, %s104
      %p111 = scmp.eq.s32.totalorder %s17, 1
      %p112 = por %p110, %p111
      %p113 = scmp.ne.s32.totalorder %s104, %s105
      %p114 = scmp.eq.s32.totalorder %s17, 0
      %p115 = por %p113, %p114
      %p116 = scmp.ne.s32.totalorder %s104, %s105
      %p117 = scmp.eq.s32.totalorder %s18, 1
      %p118 = por %p116, %p117
      %p120 = scmp.ne.s32.totalorder %s105, %s119
      %p121 = scmp.eq.s32.totalorder %s18, 0
      %p122 = por %p120, %p121
      %s124 = sadd.s32 %s123, 1
      %p127 = scmp.eq.s32.totalorder %s12, 1
      %p128 = scmp.ne.s32.totalorder %s123, %s125
      %p129 = scmp.eq.s32.totalorder %s12, 0
      %p130 = por %p128, %p129
      %p131 = scmp.ne.s32.totalorder %s123, %s125
      %p132 = scmp.eq.s32.totalorder %s17, 1
      %p133 = por %p131, %p132
      %p134 = scmp.ne.s32.totalorder %s125, %s126
      %p135 = scmp.eq.s32.totalorder %s17, 0
      %p136 = por %p134, %p135
      %p137 = scmp.ne.s32.totalorder %s125, %s126
      %p138 = scmp.eq.s32.totalorder %s18, 1
      %p139 = por %p137, %p138
      %p141 = scmp.ne.s32.totalorder %s126, %s140
      %p142 = scmp.eq.s32.totalorder %s18, 0
      %p143 = por %p141, %p142
      %s144 = ssub.s32 %s19, %s31
      %p145 = scmp.eq.s32.totalorder %s144, 0
      %s147 = sadd.s32 %s146, 1
      %s148 = scalar_select %p145, %s146, %s147
      %p151 = pneg %p145
      %p152 = scmp.eq.s32.totalorder %s12, 1
      %p153 = por %p151, %p152
      %p154 = scmp.ne.s32.totalorder %s146, %s149
      %p155 = scmp.eq.s32.totalorder %s12, 0
      %p156 = por %p154, %p155
      %p157 = scmp.ne.s32.totalorder %s146, %s149
      %p158 = scmp.eq.s32.totalorder %s17, 1
      %p159 = por %p157, %p158
      %p160 = scmp.ne.s32.totalorder %s149, %s150
      %p161 = scmp.eq.s32.totalorder %s17, 0
      %p162 = por %p160, %p161
      %p163 = scmp.ne.s32.totalorder %s149, %s150
      %p164 = scmp.eq.s32.totalorder %s18, 1
      %p165 = por %p163, %p164
      %p167 = scmp.ne.s32.totalorder %s150, %s166
      %p168 = scmp.eq.s32.totalorder %s18, 0
      %p169 = por %p167, %p168
      %p170 = scmp.le.s32.totalorder 1, %s12
      %p171 = scmp.lt.s32.totalorder %s12, 3
      %p172 = pnand %p170, %p171
      %p173 = pneg %p172
      // Predicated region
      $region9: #{tpu_custom_call.1} parent=5 // pred_check
        _
      $region10: #{tpu_custom_call.1} parent=5 // pred_check_branch
        %175 = sbr.rel (%p172) target = $region12
      $region11: #{tpu_custom_call.1} parent=5 // pred_region
        %s176 = ssub.s32 %s12, 1
        // Predicated region
        $region13: #{tpu_custom_call.1} parent=11 // pred_check
          %p177 = pneg %p73
        $region14: #{tpu_custom_call.1} parent=11 // pred_check_branch
          %179 = sbr.rel (%p177) target = $region16
        $region15: #{tpu_custom_call.1} parent=11 // pred_region
          _
        $region16: #{tpu_custom_call.1} parent=11 // pred_fallthru
          _
        // Predicated region
        $region17: #{tpu_custom_call.1} parent=11 // pred_check
          %p180 = pneg %p94
        $region18: #{tpu_custom_call.1} parent=11 // pred_check_branch
          %182 = sbr.rel (%p180) target = $region20
        $region19: #{tpu_custom_call.1} parent=11 // pred_region
          _
        $region20: #{tpu_custom_call.1} parent=11 // pred_fallthru
          _
        // Predicated region
        $region21: #{tpu_custom_call.1} parent=11 // pred_check
          %p183 = pneg %p115
        $region22: #{tpu_custom_call.1} parent=11 // pred_check_branch
          %185 = sbr.rel (%p183) target = $region24
        $region23: #{tpu_custom_call.1} parent=11 // pred_region
          _
        $region24: #{tpu_custom_call.1} parent=11 // pred_fallthru
          _
        // Predicated region
        $region25: #{tpu_custom_call.1} parent=11 // pred_check
          %p186 = pneg %p136
        $region26: #{tpu_custom_call.1} parent=11 // pred_check_branch
          %188 = sbr.rel (%p186) target = $region28
        $region27: #{tpu_custom_call.1} parent=11 // pred_region
          _
        $region28: #{tpu_custom_call.1} parent=11 // pred_fallthru
          _
      $region12: #{tpu_custom_call.1} parent=5 // pred_fallthru
        _
      %p189 = scmp.lt.s32.totalorder %s12, 2
      // Predicated region
      $region29: #{tpu_custom_call.1} parent=5 // pred_check
        %p190 = pneg %p189
      $region30: #{tpu_custom_call.1} parent=5 // pred_check_branch
        %192 = sbr.rel (%p190) target = $region32
      $region31: #{tpu_custom_call.1} parent=5 // pred_region
        // Predicated region
        $region33: #{tpu_custom_call.1} parent=31 // pred_check
          %p193 = pneg %p46
        $region34: #{tpu_custom_call.1} parent=31 // pred_check_branch
          %195 = sbr.rel (%p193) target = $region36
        $region35: #{tpu_custom_call.1} parent=31 // pred_region
          %s196 = sand.u32 %s36, 1
          %s197 = sand.u32 %s36, 1
          %s198 = smul.addr %s197, 512
          %s199 = scalar_lea.vmem [#allocation3], %s198
          %s200 = smul.u32 8, %s19
          %s201 = smul.u32 16, %s20
          %s202 = smul.addr %s200, 32
          %s203 = sadd.s32 %s201, %s202
          %s204 = smul.addr %s203, 4
          %s205 = scalar_lea.vmem %s0, %s204
          // Predicated region
          $region37: #{tpu_custom_call.1} parent=35 // pred_check
            _
          $region38: #{tpu_custom_call.1} parent=35 // pred_check_branch
            %207 = sbr.rel (0) target = $region40
          $region39: #{tpu_custom_call.1} parent=35 // pred_region
            // Predicated region
            $region41: #{tpu_custom_call.1} parent=39 // pred_check
              _
            $region42: #{tpu_custom_call.1} parent=39 // pred_check_branch
              %209 = sbr.rel target = $region44
            $region43: #{tpu_custom_call.1} parent=39 // pred_region
              // Predicated region
              $region56: #{tpu_custom_call.1} parent=43 // pred_check
                _
              $region57: #{tpu_custom_call.1} parent=43 // pred_check_branch
                %478 = sbr.rel (0) target = $region59
              $region58: #{tpu_custom_call.1} parent=43 // pred_region
                loop: start=0, step=1, limit=1
                $region60: #{tpu_custom_call.1} parent=58 // loop_pre_header
                  _
                $region61: #{tpu_custom_call.1} parent=58 // loop_header
                  %s480 = sphi 0, %s484
                  %p481 = scmp.ge.s32.totalorder %s480, 1
                  %s485 = sphi %s205, %s205
                  %s486 = sphi %s199, %s199
                $region62: #{tpu_custom_call.1} parent=58 // loop_header_branch
                  %483 = sbr.rel (%p481) target = $region66
                $region63: #{tpu_custom_call.1} parent=58 // loop_body
                  _
                $region64: #{tpu_custom_call.1} parent=58 // loop_footer
                  %s484 = sadd.s32 1, %s480
                $region65: #{tpu_custom_call.1} parent=58 // loop_footer_branch
                  %479 = sbr.rel target = $region61
                $region66: #{tpu_custom_call.1} parent=58 // loop_exit
                  _
                loop: start=0, step=1, limit=1
                $region67: #{tpu_custom_call.1} parent=58 // loop_pre_header
                  _
                $region68: #{tpu_custom_call.1} parent=58 // loop_header
                  %s489 = sphi 0, %s493
                  %p490 = scmp.ge.s32.totalorder %s489, 1
                  %s494 = sphi %s205, %s205
                  %s495 = sphi %s199, %s199
                $region69: #{tpu_custom_call.1} parent=58 // loop_header_branch
                  %492 = sbr.rel (%p490) target = $region73
                $region70: #{tpu_custom_call.1} parent=58 // loop_body
                  %v496 = vld [vmem:[%s494] sm:$0xf]
                  %497 = vst [vmem:[%s495] sm:$0xf] %v496
                  %v498 = vld [vmem:[%s494 + $0x4] sm:$0xf]
                  %499 = vst [vmem:[%s495 + $0x4] sm:$0xf] %v498
                  %v500 = vld [vmem:[%s494 + $0x8] sm:$0xf]
                  %501 = vst [vmem:[%s495 + $0x8] sm:$0xf] %v500
                  %v502 = vld [vmem:[%s494 + $0xc] sm:$0xf]
                  %503 = vst [vmem:[%s495 + $0xc] sm:$0xf] %v502
                  %v504 = vld [vmem:[%s494 + $0x10] sm:$0xf]
                  %505 = vst [vmem:[%s495 + $0x10] sm:$0xf] %v504
                  %v506 = vld [vmem:[%s494 + $0x14] sm:$0xf]
                  %507 = vst [vmem:[%s495 + $0x14] sm:$0xf] %v506
                  %v508 = vld [vmem:[%s494 + $0x18] sm:$0xf]
                  %509 = vst [vmem:[%s495 + $0x18] sm:$0xf] %v508
                  %v510 = vld [vmem:[%s494 + $0x1c] sm:$0xf]
                  %511 = vst [vmem:[%s495 + $0x1c] sm:$0xf] %v510
                  %v512 = vld [vmem:[%s494 + $0x20] sm:$0xf]
                  %513 = vst [vmem:[%s495 + $0x20] sm:$0xf] %v512
                  %v514 = vld [vmem:[%s494 + $0x24] sm:$0xf]
                  %515 = vst [vmem:[%s495 + $0x24] sm:$0xf] %v514
                  %v516 = vld [vmem:[%s494 + $0x28] sm:$0xf]
                  %517 = vst [vmem:[%s495 + $0x28] sm:$0xf] %v516
                  %v518 = vld [vmem:[%s494 + $0x2c] sm:$0xf]
                  %519 = vst [vmem:[%s495 + $0x2c] sm:$0xf] %v518
                  %v520 = vld [vmem:[%s494 + $0x30] sm:$0xf]
                  %521 = vst [vmem:[%s495 + $0x30] sm:$0xf] %v520
                  %v522 = vld [vmem:[%s494 + $0x34] sm:$0xf]
                  %523 = vst [vmem:[%s495 + $0x34] sm:$0xf] %v522
                  %v524 = vld [vmem:[%s494 + $0x38] sm:$0xf]
                  %525 = vst [vmem:[%s495 + $0x38] sm:$0xf] %v524
                  %v526 = vld [vmem:[%s494 + $0x3c] sm:$0xf]
                  %527 = vst [vmem:[%s495 + $0x3c] sm:$0xf] %v526
                  %v528 = vld [vmem:[%s494 + $0x80] sm:$0xf]
                  %529 = vst [vmem:[%s495 + $0x40] sm:$0xf] %v528
                  %v530 = vld [vmem:[%s494 + $0x84] sm:$0xf]
                  %531 = vst [vmem:[%s495 + $0x44] sm:$0xf] %v530
                  %v532 = vld [vmem:[%s494 + $0x88] sm:$0xf]
                  %533 = vst [vmem:[%s495 + $0x48] sm:$0xf] %v532
                  %v534 = vld [vmem:[%s494 + $0x8c] sm:$0xf]
                  %535 = vst [vmem:[%s495 + $0x4c] sm:$0xf] %v534
                  %v536 = vld [vmem:[%s494 + $0x90] sm:$0xf]
                  %537 = vst [vmem:[%s495 + $0x50] sm:$0xf] %v536
                  %v538 = vld [vmem:[%s494 + $0x94] sm:$0xf]
                  %539 = vst [vmem:[%s495 + $0x54] sm:$0xf] %v538
                  %v540 = vld [vmem:[%s494 + $0x98] sm:$0xf]
                  %541 = vst [vmem:[%s495 + $0x58] sm:$0xf] %v540
                  %v542 = vld [vmem:[%s494 + $0x9c] sm:$0xf]
                  %543 = vst [vmem:[%s495 + $0x5c] sm:$0xf] %v542
                  %v544 = vld [vmem:[%s494 + $0xa0] sm:$0xf]
                  %545 = vst [vmem:[%s495 + $0x60] sm:$0xf] %v544
                  %v546 = vld [vmem:[%s494 + $0xa4] sm:$0xf]
                  %547 = vst [vmem:[%s495 + $0x64] sm:$0xf] %v546
                  %v548 = vld [vmem:[%s494 + $0xa8] sm:$0xf]
                  %549 = vst [vmem:[%s495 + $0x68] sm:$0xf] %v548
                  %v550 = vld [vmem:[%s494 + $0xac] sm:$0xf]
                  %551 = vst [vmem:[%s495 + $0x6c] sm:$0xf] %v550
                  %v552 = vld [vmem:[%s494 + $0xb0] sm:$0xf]
                  %553 = vst [vmem:[%s495 + $0x70] sm:$0xf] %v552
                  %v554 = vld [vmem:[%s494 + $0xb4] sm:$0xf]
                  %555 = vst [vmem:[%s495 + $0x74] sm:$0xf] %v554
                  %v556 = vld [vmem:[%s494 + $0xb8] sm:$0xf]
                  %557 = vst [vmem:[%s495 + $0x78] sm:$0xf] %v556
                  %v558 = vld [vmem:[%s494 + $0xbc] sm:$0xf]
                  %559 = vst [vmem:[%s495 + $0x7c] sm:$0xf] %v558
                  %v560 = vld [vmem:[%s494 + $0x100] sm:$0xf]
                  %561 = vst [vmem:[%s495 + $0x80] sm:$0xf] %v560
                  %v562 = vld [vmem:[%s494 + $0x104] sm:$0xf]
                  %563 = vst [vmem:[%s495 + $0x84] sm:$0xf] %v562
                  %v564 = vld [vmem:[%s494 + $0x108] sm:$0xf]
                  %565 = vst [vmem:[%s495 + $0x88] sm:$0xf] %v564
                  %v566 = vld [vmem:[%s494 + $0x10c] sm:$0xf]
                  %567 = vst [vmem:[%s495 + $0x8c] sm:$0xf] %v566
                  %v568 = vld [vmem:[%s494 + $0x110] sm:$0xf]
                  %569 = vst [vmem:[%s495 + $0x90] sm:$0xf] %v568
                  %v570 = vld [vmem:[%s494 + $0x114] sm:$0xf]
                  %571 = vst [vmem:[%s495 + $0x94] sm:$0xf] %v570
                  %v572 = vld [vmem:[%s494 + $0x118] sm:$0xf]
                  %573 = vst [vmem:[%s495 + $0x98] sm:$0xf] %v572
                  %v574 = vld [vmem:[%s494 + $0x11c] sm:$0xf]
                  %575 = vst [vmem:[%s495 + $0x9c] sm:$0xf] %v574
                  %v576 = vld [vmem:[%s494 + $0x120] sm:$0xf]
                  %577 = vst [vmem:[%s495 + $0xa0] sm:$0xf] %v576
                  %v578 = vld [vmem:[%s494 + $0x124] sm:$0xf]
                  %579 = vst [vmem:[%s495 + $0xa4] sm:$0xf] %v578
                  %v580 = vld [vmem:[%s494 + $0x128] sm:$0xf]
                  %581 = vst [vmem:[%s495 + $0xa8] sm:$0xf] %v580
                  %v582 = vld [vmem:[%s494 + $0x12c] sm:$0xf]
                  %583 = vst [vmem:[%s495 + $0xac] sm:$0xf] %v582
                  %v584 = vld [vmem:[%s494 + $0x130] sm:$0xf]
                  %585 = vst [vmem:[%s495 + $0xb0] sm:$0xf] %v584
                  %v586 = vld [vmem:[%s494 + $0x134] sm:$0xf]
                  %587 = vst [vmem:[%s495 + $0xb4] sm:$0xf] %v586
                  %v588 = vld [vmem:[%s494 + $0x138] sm:$0xf]
                  %589 = vst [vmem:[%s495 + $0xb8] sm:$0xf] %v588
                  %v590 = vld [vmem:[%s494 + $0x13c] sm:$0xf]
                  %591 = vst [vmem:[%s495 + $0xbc] sm:$0xf] %v590
                  %v592 = vld [vmem:[%s494 + $0x180] sm:$0xf]
                  %593 = vst [vmem:[%s495 + $0xc0] sm:$0xf] %v592
                  %v594 = vld [vmem:[%s494 + $0x184] sm:$0xf]
                  %595 = vst [vmem:[%s495 + $0xc4] sm:$0xf] %v594
                  %v596 = vld [vmem:[%s494 + $0x188] sm:$0xf]
                  %597 = vst [vmem:[%s495 + $0xc8] sm:$0xf] %v596
                  %v598 = vld [vmem:[%s494 + $0x18c] sm:$0xf]
                  %599 = vst [vmem:[%s495 + $0xcc] sm:$0xf] %v598
                  %v600 = vld [vmem:[%s494 + $0x190] sm:$0xf]
                  %601 = vst [vmem:[%s495 + $0xd0] sm:$0xf] %v600
                  %v602 = vld [vmem:[%s494 + $0x194] sm:$0xf]
                  %603 = vst [vmem:[%s495 + $0xd4] sm:$0xf] %v602
                  %v604 = vld [vmem:[%s494 + $0x198] sm:$0xf]
                  %605 = vst [vmem:[%s495 + $0xd8] sm:$0xf] %v604
                  %v606 = vld [vmem:[%s494 + $0x19c] sm:$0xf]
                  %607 = vst [vmem:[%s495 + $0xdc] sm:$0xf] %v606
                  %v608 = vld [vmem:[%s494 + $0x1a0] sm:$0xf]
                  %609 = vst [vmem:[%s495 + $0xe0] sm:$0xf] %v608
                  %v610 = vld [vmem:[%s494 + $0x1a4] sm:$0xf]
                  %611 = vst [vmem:[%s495 + $0xe4] sm:$0xf] %v610
                  %v612 = vld [vmem:[%s494 + $0x1a8] sm:$0xf]
                  %613 = vst [vmem:[%s495 + $0xe8] sm:$0xf] %v612
                  %v614 = vld [vmem:[%s494 + $0x1ac] sm:$0xf]
                  %615 = vst [vmem:[%s495 + $0xec] sm:$0xf] %v614
                  %v616 = vld [vmem:[%s494 + $0x1b0] sm:$0xf]
                  %617 = vst [vmem:[%s495 + $0xf0] sm:$0xf] %v616
                  %v618 = vld [vmem:[%s494 + $0x1b4] sm:$0xf]
                  %619 = vst [vmem:[%s495 + $0xf4] sm:$0xf] %v618
                  %v620 = vld [vmem:[%s494 + $0x1b8] sm:$0xf]
                  %621 = vst [vmem:[%s495 + $0xf8] sm:$0xf] %v620
                  %v622 = vld [vmem:[%s494 + $0x1bc] sm:$0xf]
                  %623 = vst [vmem:[%s495 + $0xfc] sm:$0xf] %v622
                  %v624 = vld [vmem:[%s494 + $0x200] sm:$0xf]
                  %625 = vst [vmem:[%s495 + $0x100] sm:$0xf] %v624
                  %v626 = vld [vmem:[%s494 + $0x204] sm:$0xf]
                  %627 = vst [vmem:[%s495 + $0x104] sm:$0xf] %v626
                  %v628 = vld [vmem:[%s494 + $0x208] sm:$0xf]
                  %629 = vst [vmem:[%s495 + $0x108] sm:$0xf] %v628
                  %v630 = vld [vmem:[%s494 + $0x20c] sm:$0xf]
                  %631 = vst [vmem:[%s495 + $0x10c] sm:$0xf] %v630
                  %v632 = vld [vmem:[%s494 + $0x210] sm:$0xf]
                  %633 = vst [vmem:[%s495 + $0x110] sm:$0xf] %v632
                  %v634 = vld [vmem:[%s494 + $0x214] sm:$0xf]
                  %635 = vst [vmem:[%s495 + $0x114] sm:$0xf] %v634
                  %v636 = vld [vmem:[%s494 + $0x218] sm:$0xf]
                  %637 = vst [vmem:[%s495 + $0x118] sm:$0xf] %v636
                  %v638 = vld [vmem:[%s494 + $0x21c] sm:$0xf]
                  %639 = vst [vmem:[%s495 + $0x11c] sm:$0xf] %v638
                  %v640 = vld [vmem:[%s494 + $0x220] sm:$0xf]
                  %641 = vst [vmem:[%s495 + $0x120] sm:$0xf] %v640
                  %v642 = vld [vmem:[%s494 + $0x224] sm:$0xf]
                  %643 = vst [vmem:[%s495 + $0x124] sm:$0xf] %v642
                  %v644 = vld [vmem:[%s494 + $0x228] sm:$0xf]
                  %645 = vst [vmem:[%s495 + $0x128] sm:$0xf] %v644
                  %v646 = vld [vmem:[%s494 + $0x22c] sm:$0xf]
                  %647 = vst [vmem:[%s495 + $0x12c] sm:$0xf] %v646
                  %v648 = vld [vmem:[%s494 + $0x230] sm:$0xf]
                  %649 = vst [vmem:[%s495 + $0x130] sm:$0xf] %v648
                  %v650 = vld [vmem:[%s494 + $0x234] sm:$0xf]
                  %651 = vst [vmem:[%s495 + $0x134] sm:$0xf] %v650
                  %v652 = vld [vmem:[%s494 + $0x238] sm:$0xf]
                  %653 = vst [vmem:[%s495 + $0x138] sm:$0xf] %v652
                  %v654 = vld [vmem:[%s494 + $0x23c] sm:$0xf]
                  %655 = vst [vmem:[%s495 + $0x13c] sm:$0xf] %v654
                  %v656 = vld [vmem:[%s494 + $0x280] sm:$0xf]
                  %657 = vst [vmem:[%s495 + $0x140] sm:$0xf] %v656
                  %v658 = vld [vmem:[%s494 + $0x284] sm:$0xf]
                  %659 = vst [vmem:[%s495 + $0x144] sm:$0xf] %v658
                  %v660 = vld [vmem:[%s494 + $0x288] sm:$0xf]
                  %661 = vst [vmem:[%s495 + $0x148] sm:$0xf] %v660
                  %v662 = vld [vmem:[%s494 + $0x28c] sm:$0xf]
                  %663 = vst [vmem:[%s495 + $0x14c] sm:$0xf] %v662
                  %v664 = vld [vmem:[%s494 + $0x290] sm:$0xf]
                  %665 = vst [vmem:[%s495 + $0x150] sm:$0xf] %v664
                  %v666 = vld [vmem:[%s494 + $0x294] sm:$0xf]
                  %667 = vst [vmem:[%s495 + $0x154] sm:$0xf] %v666
                  %v668 = vld [vmem:[%s494 + $0x298] sm:$0xf]
                  %669 = vst [vmem:[%s495 + $0x158] sm:$0xf] %v668
                  %v670 = vld [vmem:[%s494 + $0x29c] sm:$0xf]
                  %671 = vst [vmem:[%s495 + $0x15c] sm:$0xf] %v670
                  %v672 = vld [vmem:[%s494 + $0x2a0] sm:$0xf]
                  %673 = vst [vmem:[%s495 + $0x160] sm:$0xf] %v672
                  %v674 = vld [vmem:[%s494 + $0x2a4] sm:$0xf]
                  %675 = vst [vmem:[%s495 + $0x164] sm:$0xf] %v674
                  %v676 = vld [vmem:[%s494 + $0x2a8] sm:$0xf]
                  %677 = vst [vmem:[%s495 + $0x168] sm:$0xf] %v676
                  %v678 = vld [vmem:[%s494 + $0x2ac] sm:$0xf]
                  %679 = vst [vmem:[%s495 + $0x16c] sm:$0xf] %v678
                  %v680 = vld [vmem:[%s494 + $0x2b0] sm:$0xf]
                  %681 = vst [vmem:[%s495 + $0x170] sm:$0xf] %v680
                  %v682 = vld [vmem:[%s494 + $0x2b4] sm:$0xf]
                  %683 = vst [vmem:[%s495 + $0x174] sm:$0xf] %v682
                  %v684 = vld [vmem:[%s494 + $0x2b8] sm:$0xf]
                  %685 = vst [vmem:[%s495 + $0x178] sm:$0xf] %v684
                  %v686 = vld [vmem:[%s494 + $0x2bc] sm:$0xf]
                  %687 = vst [vmem:[%s495 + $0x17c] sm:$0xf] %v686
                  %v688 = vld [vmem:[%s494 + $0x300] sm:$0xf]
                  %689 = vst [vmem:[%s495 + $0x180] sm:$0xf] %v688
                  %v690 = vld [vmem:[%s494 + $0x304] sm:$0xf]
                  %691 = vst [vmem:[%s495 + $0x184] sm:$0xf] %v690
                  %v692 = vld [vmem:[%s494 + $0x308] sm:$0xf]
                  %693 = vst [vmem:[%s495 + $0x188] sm:$0xf] %v692
                  %v694 = vld [vmem:[%s494 + $0x30c] sm:$0xf]
                  %695 = vst [vmem:[%s495 + $0x18c] sm:$0xf] %v694
                  %v696 = vld [vmem:[%s494 + $0x310] sm:$0xf]
                  %697 = vst [vmem:[%s495 + $0x190] sm:$0xf] %v696
                  %v698 = vld [vmem:[%s494 + $0x314] sm:$0xf]
                  %699 = vst [vmem:[%s495 + $0x194] sm:$0xf] %v698
                  %v700 = vld [vmem:[%s494 + $0x318] sm:$0xf]
                  %701 = vst [vmem:[%s495 + $0x198] sm:$0xf] %v700
                  %v702 = vld [vmem:[%s494 + $0x31c] sm:$0xf]
                  %703 = vst [vmem:[%s495 + $0x19c] sm:$0xf] %v702
                  %v704 = vld [vmem:[%s494 + $0x320] sm:$0xf]
                  %705 = vst [vmem:[%s495 + $0x1a0] sm:$0xf] %v704
                  %v706 = vld [vmem:[%s494 + $0x324] sm:$0xf]
                  %707 = vst [vmem:[%s495 + $0x1a4] sm:$0xf] %v706
                  %v708 = vld [vmem:[%s494 + $0x328] sm:$0xf]
                  %709 = vst [vmem:[%s495 + $0x1a8] sm:$0xf] %v708
                  %v710 = vld [vmem:[%s494 + $0x32c] sm:$0xf]
                  %711 = vst [vmem:[%s495 + $0x1ac] sm:$0xf] %v710
                  %v712 = vld [vmem:[%s494 + $0x330] sm:$0xf]
                  %713 = vst [vmem:[%s495 + $0x1b0] sm:$0xf] %v712
                  %v714 = vld [vmem:[%s494 + $0x334] sm:$0xf]
                  %715 = vst [vmem:[%s495 + $0x1b4] sm:$0xf] %v714
                  %v716 = vld [vmem:[%s494 + $0x338] sm:$0xf]
                  %717 = vst [vmem:[%s495 + $0x1b8] sm:$0xf] %v716
                  %v718 = vld [vmem:[%s494 + $0x33c] sm:$0xf]
                  %719 = vst [vmem:[%s495 + $0x1bc] sm:$0xf] %v718
                  %v720 = vld [vmem:[%s494 + $0x380] sm:$0xf]
                  %721 = vst [vmem:[%s495 + $0x1c0] sm:$0xf] %v720
                  %v722 = vld [vmem:[%s494 + $0x384] sm:$0xf]
                  %723 = vst [vmem:[%s495 + $0x1c4] sm:$0xf] %v722
                  %v724 = vld [vmem:[%s494 + $0x388] sm:$0xf]
                  %725 = vst [vmem:[%s495 + $0x1c8] sm:$0xf] %v724
                  %v726 = vld [vmem:[%s494 + $0x38c] sm:$0xf]
                  %727 = vst [vmem:[%s495 + $0x1cc] sm:$0xf] %v726
                  %v728 = vld [vmem:[%s494 + $0x390] sm:$0xf]
                  %729 = vst [vmem:[%s495 + $0x1d0] sm:$0xf] %v728
                  %v730 = vld [vmem:[%s494 + $0x394] sm:$0xf]
                  %731 = vst [vmem:[%s495 + $0x1d4] sm:$0xf] %v730
                  %v732 = vld [vmem:[%s494 + $0x398] sm:$0xf]
                  %733 = vst [vmem:[%s495 + $0x1d8] sm:$0xf] %v732
                  %v734 = vld [vmem:[%s494 + $0x39c] sm:$0xf]
                  %735 = vst [vmem:[%s495 + $0x1dc] sm:$0xf] %v734
                  %v736 = vld [vmem:[%s494 + $0x3a0] sm:$0xf]
                  %737 = vst [vmem:[%s495 + $0x1e0] sm:$0xf] %v736
                  %v738 = vld [vmem:[%s494 + $0x3a4] sm:$0xf]
                  %739 = vst [vmem:[%s495 + $0x1e4] sm:$0xf] %v738
                  %v740 = vld [vmem:[%s494 + $0x3a8] sm:$0xf]
                  %741 = vst [vmem:[%s495 + $0x1e8] sm:$0xf] %v740
                  %v742 = vld [vmem:[%s494 + $0x3ac] sm:$0xf]
                  %743 = vst [vmem:[%s495 + $0x1ec] sm:$0xf] %v742
                  %v744 = vld [vmem:[%s494 + $0x3b0] sm:$0xf]
                  %745 = vst [vmem:[%s495 + $0x1f0] sm:$0xf] %v744
                  %v746 = vld [vmem:[%s494 + $0x3b4] sm:$0xf]
                  %747 = vst [vmem:[%s495 + $0x1f4] sm:$0xf] %v746
                  %v748 = vld [vmem:[%s494 + $0x3b8] sm:$0xf]
                  %749 = vst [vmem:[%s495 + $0x1f8] sm:$0xf] %v748
                  %v750 = vld [vmem:[%s494 + $0x3bc] sm:$0xf]
                  %751 = vst [vmem:[%s495 + $0x1fc] sm:$0xf] %v750
                $region71: #{tpu_custom_call.1} parent=58 // loop_footer
                  %s493 = sadd.s32 1, %s489
                $region72: #{tpu_custom_call.1} parent=58 // loop_footer_branch
                  %488 = sbr.rel target = $region68
                $region73: #{tpu_custom_call.1} parent=58 // loop_exit
                  _
              $region59: #{tpu_custom_call.1} parent=43 // pred_fallthru
                _
            $region44: #{tpu_custom_call.1} parent=39 // pred_fallthru
              _
            // Predicated region
            $region45: #{tpu_custom_call.1} parent=39 // pred_check
              _
            $region46: #{tpu_custom_call.1} parent=39 // pred_check_branch
              %211 = sbr.rel (0) target = $region48
            $region47: #{tpu_custom_call.1} parent=39 // pred_region
              loop: start=0, step=1, limit=1
              $region49: #{tpu_custom_call.1} parent=47 // loop_pre_header
                _
              $region50: #{tpu_custom_call.1} parent=47 // loop_header
                %s214 = sphi 0, %s218
                %p215 = scmp.ge.s32.totalorder %s214, 1
                %s219 = sphi %s205, %s205
                %s220 = sphi %s199, %s199
              $region51: #{tpu_custom_call.1} parent=47 // loop_header_branch
                %217 = sbr.rel (%p215) target = $region55
              $region52: #{tpu_custom_call.1} parent=47 // loop_body
                %v221 = vld [vmem:[%s219] sm:$0xf]
                %222 = vst [vmem:[%s220] sm:$0xf] %v221
                %v223 = vld [vmem:[%s219 + $0x4] sm:$0xf]
                %224 = vst [vmem:[%s220 + $0x4] sm:$0xf] %v223
                %v225 = vld [vmem:[%s219 + $0x8] sm:$0xf]
                %226 = vst [vmem:[%s220 + $0x8] sm:$0xf] %v225
                %v227 = vld [vmem:[%s219 + $0xc] sm:$0xf]
                %228 = vst [vmem:[%s220 + $0xc] sm:$0xf] %v227
                %v229 = vld [vmem:[%s219 + $0x10] sm:$0xf]
                %230 = vst [vmem:[%s220 + $0x10] sm:$0xf] %v229
                %v231 = vld [vmem:[%s219 + $0x14] sm:$0xf]
                %232 = vst [vmem:[%s220 + $0x14] sm:$0xf] %v231
                %v233 = vld [vmem:[%s219 + $0x18] sm:$0xf]
                %234 = vst [vmem:[%s220 + $0x18] sm:$0xf] %v233
                %v235 = vld [vmem:[%s219 + $0x1c] sm:$0xf]
                %236 = vst [vmem:[%s220 + $0x1c] sm:$0xf] %v235
                %v237 = vld [vmem:[%s219 + $0x20] sm:$0xf]
                %238 = vst [vmem:[%s220 + $0x20] sm:$0xf] %v237
                %v239 = vld [vmem:[%s219 + $0x24] sm:$0xf]
                %240 = vst [vmem:[%s220 + $0x24] sm:$0xf] %v239
                %v241 = vld [vmem:[%s219 + $0x28] sm:$0xf]
                %242 = vst [vmem:[%s220 + $0x28] sm:$0xf] %v241
                %v243 = vld [vmem:[%s219 + $0x2c] sm:$0xf]
                %244 = vst [vmem:[%s220 + $0x2c] sm:$0xf] %v243
                %v245 = vld [vmem:[%s219 + $0x30] sm:$0xf]
                %246 = vst [vmem:[%s220 + $0x30] sm:$0xf] %v245
                %v247 = vld [vmem:[%s219 + $0x34] sm:$0xf]
                %248 = vst [vmem:[%s220 + $0x34] sm:$0xf] %v247
                %v249 = vld [vmem:[%s219 + $0x38] sm:$0xf]
                %250 = vst [vmem:[%s220 + $0x38] sm:$0xf] %v249
                %v251 = vld [vmem:[%s219 + $0x3c] sm:$0xf]
                %252 = vst [vmem:[%s220 + $0x3c] sm:$0xf] %v251
                %v253 = vld [vmem:[%s219 + $0x80] sm:$0xf]
                %254 = vst [vmem:[%s220 + $0x40] sm:$0xf] %v253
                %v255 = vld [vmem:[%s219 + $0x84] sm:$0xf]
                %256 = vst [vmem:[%s220 + $0x44] sm:$0xf] %v255
                %v257 = vld [vmem:[%s219 + $0x88] sm:$0xf]
                %258 = vst [vmem:[%s220 + $0x48] sm:$0xf] %v257
                %v259 = vld [vmem:[%s219 + $0x8c] sm:$0xf]
                %260 = vst [vmem:[%s220 + $0x4c] sm:$0xf] %v259
                %v261 = vld [vmem:[%s219 + $0x90] sm:$0xf]
                %262 = vst [vmem:[%s220 + $0x50] sm:$0xf] %v261
                %v263 = vld [vmem:[%s219 + $0x94] sm:$0xf]
                %264 = vst [vmem:[%s220 + $0x54] sm:$0xf] %v263
                %v265 = vld [vmem:[%s219 + $0x98] sm:$0xf]
                %266 = vst [vmem:[%s220 + $0x58] sm:$0xf] %v265
                %v267 = vld [vmem:[%s219 + $0x9c] sm:$0xf]
                %268 = vst [vmem:[%s220 + $0x5c] sm:$0xf] %v267
                %v269 = vld [vmem:[%s219 + $0xa0] sm:$0xf]
                %270 = vst [vmem:[%s220 + $0x60] sm:$0xf] %v269
                %v271 = vld [vmem:[%s219 + $0xa4] sm:$0xf]
                %272 = vst [vmem:[%s220 + $0x64] sm:$0xf] %v271
                %v273 = vld [vmem:[%s219 + $0xa8] sm:$0xf]
                %274 = vst [vmem:[%s220 + $0x68] sm:$0xf] %v273
                %v275 = vld [vmem:[%s219 + $0xac] sm:$0xf]
                %276 = vst [vmem:[%s220 + $0x6c] sm:$0xf] %v275
                %v277 = vld [vmem:[%s219 + $0xb0] sm:$0xf]
                %278 = vst [vmem:[%s220 + $0x70] sm:$0xf] %v277
                %v279 = vld [vmem:[%s219 + $0xb4] sm:$0xf]
                %280 = vst [vmem:[%s220 + $0x74] sm:$0xf] %v279
                %v281 = vld [vmem:[%s219 + $0xb8] sm:$0xf]
                %282 = vst [vmem:[%s220 + $0x78] sm:$0xf] %v281
                %v283 = vld [vmem:[%s219 + $0xbc] sm:$0xf]
                %284 = vst [vmem:[%s220 + $0x7c] sm:$0xf] %v283
                %v285 = vld [vmem:[%s219 + $0x100] sm:$0xf]
                %286 = vst [vmem:[%s220 + $0x80] sm:$0xf] %v285
                %v287 = vld [vmem:[%s219 + $0x104] sm:$0xf]
                %288 = vst [vmem:[%s220 + $0x84] sm:$0xf] %v287
                %v289 = vld [vmem:[%s219 + $0x108] sm:$0xf]
                %290 = vst [vmem:[%s220 + $0x88] sm:$0xf] %v289
                %v291 = vld [vmem:[%s219 + $0x10c] sm:$0xf]
                %292 = vst [vmem:[%s220 + $0x8c] sm:$0xf] %v291
                %v293 = vld [vmem:[%s219 + $0x110] sm:$0xf]
                %294 = vst [vmem:[%s220 + $0x90] sm:$0xf] %v293
                %v295 = vld [vmem:[%s219 + $0x114] sm:$0xf]
                %296 = vst [vmem:[%s220 + $0x94] sm:$0xf] %v295
                %v297 = vld [vmem:[%s219 + $0x118] sm:$0xf]
                %298 = vst [vmem:[%s220 + $0x98] sm:$0xf] %v297
                %v299 = vld [vmem:[%s219 + $0x11c] sm:$0xf]
                %300 = vst [vmem:[%s220 + $0x9c] sm:$0xf] %v299
                %v301 = vld [vmem:[%s219 + $0x120] sm:$0xf]
                %302 = vst [vmem:[%s220 + $0xa0] sm:$0xf] %v301
                %v303 = vld [vmem:[%s219 + $0x124] sm:$0xf]
                %304 = vst [vmem:[%s220 + $0xa4] sm:$0xf] %v303
                %v305 = vld [vmem:[%s219 + $0x128] sm:$0xf]
                %306 = vst [vmem:[%s220 + $0xa8] sm:$0xf] %v305
                %v307 = vld [vmem:[%s219 + $0x12c] sm:$0xf]
                %308 = vst [vmem:[%s220 + $0xac] sm:$0xf] %v307
                %v309 = vld [vmem:[%s219 + $0x130] sm:$0xf]
                %310 = vst [vmem:[%s220 + $0xb0] sm:$0xf] %v309
                %v311 = vld [vmem:[%s219 + $0x134] sm:$0xf]
                %312 = vst [vmem:[%s220 + $0xb4] sm:$0xf] %v311
                %v313 = vld [vmem:[%s219 + $0x138] sm:$0xf]
                %314 = vst [vmem:[%s220 + $0xb8] sm:$0xf] %v313
                %v315 = vld [vmem:[%s219 + $0x13c] sm:$0xf]
                %316 = vst [vmem:[%s220 + $0xbc] sm:$0xf] %v315
                %v317 = vld [vmem:[%s219 + $0x180] sm:$0xf]
                %318 = vst [vmem:[%s220 + $0xc0] sm:$0xf] %v317
                %v319 = vld [vmem:[%s219 + $0x184] sm:$0xf]
                %320 = vst [vmem:[%s220 + $0xc4] sm:$0xf] %v319
                %v321 = vld [vmem:[%s219 + $0x188] sm:$0xf]
                %322 = vst [vmem:[%s220 + $0xc8] sm:$0xf] %v321
                %v323 = vld [vmem:[%s219 + $0x18c] sm:$0xf]
                %324 = vst [vmem:[%s220 + $0xcc] sm:$0xf] %v323
                %v325 = vld [vmem:[%s219 + $0x190] sm:$0xf]
                %326 = vst [vmem:[%s220 + $0xd0] sm:$0xf] %v325
                %v327 = vld [vmem:[%s219 + $0x194] sm:$0xf]
                %328 = vst [vmem:[%s220 + $0xd4] sm:$0xf] %v327
                %v329 = vld [vmem:[%s219 + $0x198] sm:$0xf]
                %330 = vst [vmem:[%s220 + $0xd8] sm:$0xf] %v329
                %v331 = vld [vmem:[%s219 + $0x19c] sm:$0xf]
                %332 = vst [vmem:[%s220 + $0xdc] sm:$0xf] %v331
                %v333 = vld [vmem:[%s219 + $0x1a0] sm:$0xf]
                %334 = vst [vmem:[%s220 + $0xe0] sm:$0xf] %v333
                %v335 = vld [vmem:[%s219 + $0x1a4] sm:$0xf]
                %336 = vst [vmem:[%s220 + $0xe4] sm:$0xf] %v335
                %v337 = vld [vmem:[%s219 + $0x1a8] sm:$0xf]
                %338 = vst [vmem:[%s220 + $0xe8] sm:$0xf] %v337
                %v339 = vld [vmem:[%s219 + $0x1ac] sm:$0xf]
                %340 = vst [vmem:[%s220 + $0xec] sm:$0xf] %v339
                %v341 = vld [vmem:[%s219 + $0x1b0] sm:$0xf]
                %342 = vst [vmem:[%s220 + $0xf0] sm:$0xf] %v341
                %v343 = vld [vmem:[%s219 + $0x1b4] sm:$0xf]
                %344 = vst [vmem:[%s220 + $0xf4] sm:$0xf] %v343
                %v345 = vld [vmem:[%s219 + $0x1b8] sm:$0xf]
                %346 = vst [vmem:[%s220 + $0xf8] sm:$0xf] %v345
                %v347 = vld [vmem:[%s219 + $0x1bc] sm:$0xf]
                %348 = vst [vmem:[%s220 + $0xfc] sm:$0xf] %v347
                %v349 = vld [vmem:[%s219 + $0x200] sm:$0xf]
                %350 = vst [vmem:[%s220 + $0x100] sm:$0xf] %v349
                %v351 = vld [vmem:[%s219 + $0x204] sm:$0xf]
                %352 = vst [vmem:[%s220 + $0x104] sm:$0xf] %v351
                %v353 = vld [vmem:[%s219 + $0x208] sm:$0xf]
                %354 = vst [vmem:[%s220 + $0x108] sm:$0xf] %v353
                %v355 = vld [vmem:[%s219 + $0x20c] sm:$0xf]
                %356 = vst [vmem:[%s220 + $0x10c] sm:$0xf] %v355
                %v357 = vld [vmem:[%s219 + $0x210] sm:$0xf]
                %358 = vst [vmem:[%s220 + $0x110] sm:$0xf] %v357
                %v359 = vld [vmem:[%s219 + $0x214] sm:$0xf]
                %360 = vst [vmem:[%s220 + $0x114] sm:$0xf] %v359
                %v361 = vld [vmem:[%s219 + $0x218] sm:$0xf]
                %362 = vst [vmem:[%s220 + $0x118] sm:$0xf] %v361
                %v363 = vld [vmem:[%s219 + $0x21c] sm:$0xf]
                %364 = vst [vmem:[%s220 + $0x11c] sm:$0xf] %v363
                %v365 = vld [vmem:[%s219 + $0x220] sm:$0xf]
                %366 = vst [vmem:[%s220 + $0x120] sm:$0xf] %v365
                %v367 = vld [vmem:[%s219 + $0x224] sm:$0xf]
                %368 = vst [vmem:[%s220 + $0x124] sm:$0xf] %v367
                %v369 = vld [vmem:[%s219 + $0x228] sm:$0xf]
                %370 = vst [vmem:[%s220 + $0x128] sm:$0xf] %v369
                %v371 = vld [vmem:[%s219 + $0x22c] sm:$0xf]
                %372 = vst [vmem:[%s220 + $0x12c] sm:$0xf] %v371
                %v373 = vld [vmem:[%s219 + $0x230] sm:$0xf]
                %374 = vst [vmem:[%s220 + $0x130] sm:$0xf] %v373
                %v375 = vld [vmem:[%s219 + $0x234] sm:$0xf]
                %376 = vst [vmem:[%s220 + $0x134] sm:$0xf] %v375
                %v377 = vld [vmem:[%s219 + $0x238] sm:$0xf]
                %378 = vst [vmem:[%s220 + $0x138] sm:$0xf] %v377
                %v379 = vld [vmem:[%s219 + $0x23c] sm:$0xf]
                %380 = vst [vmem:[%s220 + $0x13c] sm:$0xf] %v379
                %v381 = vld [vmem:[%s219 + $0x280] sm:$0xf]
                %382 = vst [vmem:[%s220 + $0x140] sm:$0xf] %v381
                %v383 = vld [vmem:[%s219 + $0x284] sm:$0xf]
                %384 = vst [vmem:[%s220 + $0x144] sm:$0xf] %v383
                %v385 = vld [vmem:[%s219 + $0x288] sm:$0xf]
                %386 = vst [vmem:[%s220 + $0x148] sm:$0xf] %v385
                %v387 = vld [vmem:[%s219 + $0x28c] sm:$0xf]
                %388 = vst [vmem:[%s220 + $0x14c] sm:$0xf] %v387
                %v389 = vld [vmem:[%s219 + $0x290] sm:$0xf]
                %390 = vst [vmem:[%s220 + $0x150] sm:$0xf] %v389
                %v391 = vld [vmem:[%s219 + $0x294] sm:$0xf]
                %392 = vst [vmem:[%s220 + $0x154] sm:$0xf] %v391
                %v393 = vld [vmem:[%s219 + $0x298] sm:$0xf]
                %394 = vst [vmem:[%s220 + $0x158] sm:$0xf] %v393
                %v395 = vld [vmem:[%s219 + $0x29c] sm:$0xf]
                %396 = vst [vmem:[%s220 + $0x15c] sm:$0xf] %v395
                %v397 = vld [vmem:[%s219 + $0x2a0] sm:$0xf]
                %398 = vst [vmem:[%s220 + $0x160] sm:$0xf] %v397
                %v399 = vld [vmem:[%s219 + $0x2a4] sm:$0xf]
                %400 = vst [vmem:[%s220 + $0x164] sm:$0xf] %v399
                %v401 = vld [vmem:[%s219 + $0x2a8] sm:$0xf]
                %402 = vst [vmem:[%s220 + $0x168] sm:$0xf] %v401
                %v403 = vld [vmem:[%s219 + $0x2ac] sm:$0xf]
                %404 = vst [vmem:[%s220 + $0x16c] sm:$0xf] %v403
                %v405 = vld [vmem:[%s219 + $0x2b0] sm:$0xf]
                %406 = vst [vmem:[%s220 + $0x170] sm:$0xf] %v405
                %v407 = vld [vmem:[%s219 + $0x2b4] sm:$0xf]
                %408 = vst [vmem:[%s220 + $0x174] sm:$0xf] %v407
                %v409 = vld [vmem:[%s219 + $0x2b8] sm:$0xf]
                %410 = vst [vmem:[%s220 + $0x178] sm:$0xf] %v409
                %v411 = vld [vmem:[%s219 + $0x2bc] sm:$0xf]
                %412 = vst [vmem:[%s220 + $0x17c] sm:$0xf] %v411
                %v413 = vld [vmem:[%s219 + $0x300] sm:$0xf]
                %414 = vst [vmem:[%s220 + $0x180] sm:$0xf] %v413
                %v415 = vld [vmem:[%s219 + $0x304] sm:$0xf]
                %416 = vst [vmem:[%s220 + $0x184] sm:$0xf] %v415
                %v417 = vld [vmem:[%s219 + $0x308] sm:$0xf]
                %418 = vst [vmem:[%s220 + $0x188] sm:$0xf] %v417
                %v419 = vld [vmem:[%s219 + $0x30c] sm:$0xf]
                %420 = vst [vmem:[%s220 + $0x18c] sm:$0xf] %v419
                %v421 = vld [vmem:[%s219 + $0x310] sm:$0xf]
                %422 = vst [vmem:[%s220 + $0x190] sm:$0xf] %v421
                %v423 = vld [vmem:[%s219 + $0x314] sm:$0xf]
                %424 = vst [vmem:[%s220 + $0x194] sm:$0xf] %v423
                %v425 = vld [vmem:[%s219 + $0x318] sm:$0xf]
                %426 = vst [vmem:[%s220 + $0x198] sm:$0xf] %v425
                %v427 = vld [vmem:[%s219 + $0x31c] sm:$0xf]
                %428 = vst [vmem:[%s220 + $0x19c] sm:$0xf] %v427
                %v429 = vld [vmem:[%s219 + $0x320] sm:$0xf]
                %430 = vst [vmem:[%s220 + $0x1a0] sm:$0xf] %v429
                %v431 = vld [vmem:[%s219 + $0x324] sm:$0xf]
                %432 = vst [vmem:[%s220 + $0x1a4] sm:$0xf] %v431
                %v433 = vld [vmem:[%s219 + $0x328] sm:$0xf]
                %434 = vst [vmem:[%s220 + $0x1a8] sm:$0xf] %v433
                %v435 = vld [vmem:[%s219 + $0x32c] sm:$0xf]
                %436 = vst [vmem:[%s220 + $0x1ac] sm:$0xf] %v435
                %v437 = vld [vmem:[%s219 + $0x330] sm:$0xf]
                %438 = vst [vmem:[%s220 + $0x1b0] sm:$0xf] %v437
                %v439 = vld [vmem:[%s219 + $0x334] sm:$0xf]
                %440 = vst [vmem:[%s220 + $0x1b4] sm:$0xf] %v439
                %v441 = vld [vmem:[%s219 + $0x338] sm:$0xf]
                %442 = vst [vmem:[%s220 + $0x1b8] sm:$0xf] %v441
                %v443 = vld [vmem:[%s219 + $0x33c] sm:$0xf]
                %444 = vst [vmem:[%s220 + $0x1bc] sm:$0xf] %v443
                %v445 = vld [vmem:[%s219 + $0x380] sm:$0xf]
                %446 = vst [vmem:[%s220 + $0x1c0] sm:$0xf] %v445
                %v447 = vld [vmem:[%s219 + $0x384] sm:$0xf]
                %448 = vst [vmem:[%s220 + $0x1c4] sm:$0xf] %v447
                %v449 = vld [vmem:[%s219 + $0x388] sm:$0xf]
                %450 = vst [vmem:[%s220 + $0x1c8] sm:$0xf] %v449
                %v451 = vld [vmem:[%s219 + $0x38c] sm:$0xf]
                %452 = vst [vmem:[%s220 + $0x1cc] sm:$0xf] %v451
                %v453 = vld [vmem:[%s219 + $0x390] sm:$0xf]
                %454 = vst [vmem:[%s220 + $0x1d0] sm:$0xf] %v453
                %v455 = vld [vmem:[%s219 + $0x394] sm:$0xf]
                %456 = vst [vmem:[%s220 + $0x1d4] sm:$0xf] %v455
                %v457 = vld [vmem:[%s219 + $0x398] sm:$0xf]
                %458 = vst [vmem:[%s220 + $0x1d8] sm:$0xf] %v457
                %v459 = vld [vmem:[%s219 + $0x39c] sm:$0xf]
                %460 = vst [vmem:[%s220 + $0x1dc] sm:$0xf] %v459
                %v461 = vld [vmem:[%s219 + $0x3a0] sm:$0xf]
                %462 = vst [vmem:[%s220 + $0x1e0] sm:$0xf] %v461
                %v463 = vld [vmem:[%s219 + $0x3a4] sm:$0xf]
                %464 = vst [vmem:[%s220 + $0x1e4] sm:$0xf] %v463
                %v465 = vld [vmem:[%s219 + $0x3a8] sm:$0xf]
                %466 = vst [vmem:[%s220 + $0x1e8] sm:$0xf] %v465
                %v467 = vld [vmem:[%s219 + $0x3ac] sm:$0xf]
                %468 = vst [vmem:[%s220 + $0x1ec] sm:$0xf] %v467
                %v469 = vld [vmem:[%s219 + $0x3b0] sm:$0xf]
                %470 = vst [vmem:[%s220 + $0x1f0] sm:$0xf] %v469
                %v471 = vld [vmem:[%s219 + $0x3b4] sm:$0xf]
                %472 = vst [vmem:[%s220 + $0x1f4] sm:$0xf] %v471
                %v473 = vld [vmem:[%s219 + $0x3b8] sm:$0xf]
                %474 = vst [vmem:[%s220 + $0x1f8] sm:$0xf] %v473
                %v475 = vld [vmem:[%s219 + $0x3bc] sm:$0xf]
                %476 = vst [vmem:[%s220 + $0x1fc] sm:$0xf] %v475
              $region53: #{tpu_custom_call.1} parent=47 // loop_footer
                %s218 = sadd.s32 1, %s214
              $region54: #{tpu_custom_call.1} parent=47 // loop_footer_branch
                %213 = sbr.rel target = $region50
              $region55: #{tpu_custom_call.1} parent=47 // loop_exit
                _
            $region48: #{tpu_custom_call.1} parent=39 // pred_fallthru
              _
          $region40: #{tpu_custom_call.1} parent=35 // pred_fallthru
            _
          %752 = vnop
        $region36: #{tpu_custom_call.1} parent=31 // pred_fallthru
          _
      $region32: #{tpu_custom_call.1} parent=5 // pred_fallthru
        _
      %p753 = scmp.le.s32.totalorder 1, %s12
      %p754 = scmp.lt.s32.totalorder %s12, 3
      %p755 = pnand %p753, %p754
      %p756 = pneg %p755
      // Predicated region
      $region74: #{tpu_custom_call.1} parent=5 // pred_check
        _
      $region75: #{tpu_custom_call.1} parent=5 // pred_check_branch
        %758 = sbr.rel (%p755) target = $region77
      $region76: #{tpu_custom_call.1} parent=5 // pred_region
        %s759 = ssub.s32 %s12, 1
        %s760 = sand.u32 %s39, 1
        %s761 = sand.u32 %s39, 1
        %s762 = smul.addr %s761, 512
        %s763 = scalar_lea.vmem [#allocation3], %s762
        // Predicated region
        $region78: #{tpu_custom_call.1} parent=76 // pred_check
          %p764 = pneg %p52
        $region79: #{tpu_custom_call.1} parent=76 // pred_check_branch
          %766 = sbr.rel (%p764) target = $region81
        $region80: #{tpu_custom_call.1} parent=76 // pred_region
          _
        $region81: #{tpu_custom_call.1} parent=76 // pred_fallthru
          _
        %s767 = sand.u32 %s39, 1
        %s768 = sand.u32 %s39, 1
        %s769 = smul.addr %s768, 512
        %s770 = scalar_lea.vmem [#allocation3], %s769
        %p771 = pneg %p52
        %p772 = pneg %p49
        %p773 = pneg %p73
        %p774 = pneg %p70
        %p775 = pneg %p94
        %p776 = pneg %p91
        %p777 = pneg %p115
        %p778 = pneg %p112
        %p779 = pneg %p136
        %p780 = pneg %p133
        %p781 = pneg %p162
        %p782 = pneg %p159
        %s783 = smul.u32 8, %s21
        %s784 = smul.u32 16, %s22
        %p786 = scmp.eq.s32.totalorder %s22, 0
        // Predicated region
        $region82: #{tpu_custom_call.1} parent=76 // pred_check
          %p787 = pneg %p786
        $region83: #{tpu_custom_call.1} parent=76 // pred_check_branch
          %789 = sbr.rel (%p787) target = $region85
        $region84: #{tpu_custom_call.1} parent=76 // pred_region
          %790 = vst [vmem:[#allocation2] sm:$0xff] 0.0
        $region85: #{tpu_custom_call.1} parent=76 // pred_fallthru
          _
        %v791 = vld [vmem:[%s763] sm:$0xf]
        %v792 = vld [vmem:[%s763 + $0x4] sm:$0xf]
        %v793 = vld [vmem:[%s763 + $0x8] sm:$0xf]
        %v794 = vld [vmem:[%s763 + $0xc] sm:$0xf]
        %v795 = vld [vmem:[%s763 + $0x10] sm:$0xf]
        %v796 = vld [vmem:[%s763 + $0x14] sm:$0xf]
        %v797 = vld [vmem:[%s763 + $0x18] sm:$0xf]
        %v798 = vld [vmem:[%s763 + $0x1c] sm:$0xf]
        %v799 = vld [vmem:[%s763 + $0x20] sm:$0xf]
        %v800 = vld [vmem:[%s763 + $0x24] sm:$0xf]
        %v801 = vld [vmem:[%s763 + $0x28] sm:$0xf]
        %v802 = vld [vmem:[%s763 + $0x2c] sm:$0xf]
        %v803 = vld [vmem:[%s763 + $0x30] sm:$0xf]
        %v804 = vld [vmem:[%s763 + $0x34] sm:$0xf]
        %v805 = vld [vmem:[%s763 + $0x38] sm:$0xf]
        %v806 = vld [vmem:[%s763 + $0x3c] sm:$0xf]
        %v807 = vld [vmem:[%s763 + $0x40] sm:$0xf]
        %v808 = vld [vmem:[%s763 + $0x44] sm:$0xf]
        %v809 = vld [vmem:[%s763 + $0x48] sm:$0xf]
        %v810 = vld [vmem:[%s763 + $0x4c] sm:$0xf]
        %v811 = vld [vmem:[%s763 + $0x50] sm:$0xf]
        %v812 = vld [vmem:[%s763 + $0x54] sm:$0xf]
        %v813 = vld [vmem:[%s763 + $0x58] sm:$0xf]
        %v814 = vld [vmem:[%s763 + $0x5c] sm:$0xf]
        %v815 = vld [vmem:[%s763 + $0x60] sm:$0xf]
        %v816 = vld [vmem:[%s763 + $0x64] sm:$0xf]
        %v817 = vld [vmem:[%s763 + $0x68] sm:$0xf]
        %v818 = vld [vmem:[%s763 + $0x6c] sm:$0xf]
        %v819 = vld [vmem:[%s763 + $0x70] sm:$0xf]
        %v820 = vld [vmem:[%s763 + $0x74] sm:$0xf]
        %v821 = vld [vmem:[%s763 + $0x78] sm:$0xf]
        %v822 = vld [vmem:[%s763 + $0x7c] sm:$0xf]
        %v823 = vld [vmem:[%s763 + $0x80] sm:$0xf]
        %v824 = vld [vmem:[%s763 + $0x84] sm:$0xf]
        %v825 = vld [vmem:[%s763 + $0x88] sm:$0xf]
        %v826 = vld [vmem:[%s763 + $0x8c] sm:$0xf]
        %v827 = vld [vmem:[%s763 + $0x90] sm:$0xf]
        %v828 = vld [vmem:[%s763 + $0x94] sm:$0xf]
        %v829 = vld [vmem:[%s763 + $0x98] sm:$0xf]
        %v830 = vld [vmem:[%s763 + $0x9c] sm:$0xf]
        %v831 = vld [vmem:[%s763 + $0xa0] sm:$0xf]
        %v832 = vld [vmem:[%s763 + $0xa4] sm:$0xf]
        %v833 = vld [vmem:[%s763 + $0xa8] sm:$0xf]
        %v834 = vld [vmem:[%s763 + $0xac] sm:$0xf]
        %v835 = vld [vmem:[%s763 + $0xb0] sm:$0xf]
        %v836 = vld [vmem:[%s763 + $0xb4] sm:$0xf]
        %v837 = vld [vmem:[%s763 + $0xb8] sm:$0xf]
        %v838 = vld [vmem:[%s763 + $0xbc] sm:$0xf]
        %v839 = vld [vmem:[%s763 + $0xc0] sm:$0xf]
        %v840 = vld [vmem:[%s763 + $0xc4] sm:$0xf]
        %v841 = vld [vmem:[%s763 + $0xc8] sm:$0xf]
        %v842 = vld [vmem:[%s763 + $0xcc] sm:$0xf]
        %v843 = vld [vmem:[%s763 + $0xd0] sm:$0xf]
        %v844 = vld [vmem:[%s763 + $0xd4] sm:$0xf]
        %v845 = vld [vmem:[%s763 + $0xd8] sm:$0xf]
        %v846 = vld [vmem:[%s763 + $0xdc] sm:$0xf]
        %v847 = vld [vmem:[%s763 + $0xe0] sm:$0xf]
        %v848 = vld [vmem:[%s763 + $0xe4] sm:$0xf]
        %v849 = vld [vmem:[%s763 + $0xe8] sm:$0xf]
        %v850 = vld [vmem:[%s763 + $0xec] sm:$0xf]
        %v851 = vld [vmem:[%s763 + $0xf0] sm:$0xf]
        %v852 = vld [vmem:[%s763 + $0xf4] sm:$0xf]
        %v853 = vld [vmem:[%s763 + $0xf8] sm:$0xf]
        %v854 = vld [vmem:[%s763 + $0xfc] sm:$0xf]
        %v855 = vld [vmem:[%s763 + $0x100] sm:$0xf]
        %v856 = vld [vmem:[%s763 + $0x104] sm:$0xf]
        %v857 = vld [vmem:[%s763 + $0x108] sm:$0xf]
        %v858 = vld [vmem:[%s763 + $0x10c] sm:$0xf]
        %v859 = vld [vmem:[%s763 + $0x110] sm:$0xf]
        %v860 = vld [vmem:[%s763 + $0x114] sm:$0xf]
        %v861 = vld [vmem:[%s763 + $0x118] sm:$0xf]
        %v862 = vld [vmem:[%s763 + $0x11c] sm:$0xf]
        %v863 = vld [vmem:[%s763 + $0x120] sm:$0xf]
        %v864 = vld [vmem:[%s763 + $0x124] sm:$0xf]
        %v865 = vld [vmem:[%s763 + $0x128] sm:$0xf]
        %v866 = vld [vmem:[%s763 + $0x12c] sm:$0xf]
        %v867 = vld [vmem:[%s763 + $0x130] sm:$0xf]
        %v868 = vld [vmem:[%s763 + $0x134] sm:$0xf]
        %v869 = vld [vmem:[%s763 + $0x138] sm:$0xf]
        %v870 = vld [vmem:[%s763 + $0x13c] sm:$0xf]
        %v871 = vld [vmem:[%s763 + $0x140] sm:$0xf]
        %v872 = vld [vmem:[%s763 + $0x144] sm:$0xf]
        %v873 = vld [vmem:[%s763 + $0x148] sm:$0xf]
        %v874 = vld [vmem:[%s763 + $0x14c] sm:$0xf]
        %v875 = vld [vmem:[%s763 + $0x150] sm:$0xf]
        %v876 = vld [vmem:[%s763 + $0x154] sm:$0xf]
        %v877 = vld [vmem:[%s763 + $0x158] sm:$0xf]
        %v878 = vld [vmem:[%s763 + $0x15c] sm:$0xf]
        %v879 = vld [vmem:[%s763 + $0x160] sm:$0xf]
        %v880 = vld [vmem:[%s763 + $0x164] sm:$0xf]
        %v881 = vld [vmem:[%s763 + $0x168] sm:$0xf]
        %v882 = vld [vmem:[%s763 + $0x16c] sm:$0xf]
        %v883 = vld [vmem:[%s763 + $0x170] sm:$0xf]
        %v884 = vld [vmem:[%s763 + $0x174] sm:$0xf]
        %v885 = vld [vmem:[%s763 + $0x178] sm:$0xf]
        %v886 = vld [vmem:[%s763 + $0x17c] sm:$0xf]
        %v887 = vld [vmem:[%s763 + $0x180] sm:$0xf]
        %v888 = vld [vmem:[%s763 + $0x184] sm:$0xf]
        %v889 = vld [vmem:[%s763 + $0x188] sm:$0xf]
        %v890 = vld [vmem:[%s763 + $0x18c] sm:$0xf]
        %v891 = vld [vmem:[%s763 + $0x190] sm:$0xf]
        %v892 = vld [vmem:[%s763 + $0x194] sm:$0xf]
        %v893 = vld [vmem:[%s763 + $0x198] sm:$0xf]
        %v894 = vld [vmem:[%s763 + $0x19c] sm:$0xf]
        %v895 = vld [vmem:[%s763 + $0x1a0] sm:$0xf]
        %v896 = vld [vmem:[%s763 + $0x1a4] sm:$0xf]
        %v897 = vld [vmem:[%s763 + $0x1a8] sm:$0xf]
        %v898 = vld [vmem:[%s763 + $0x1ac] sm:$0xf]
        %v899 = vld [vmem:[%s763 + $0x1b0] sm:$0xf]
        %v900 = vld [vmem:[%s763 + $0x1b4] sm:$0xf]
        %v901 = vld [vmem:[%s763 + $0x1b8] sm:$0xf]
        %v902 = vld [vmem:[%s763 + $0x1bc] sm:$0xf]
        %v903 = vld [vmem:[%s763 + $0x1c0] sm:$0xf]
        %v904 = vld [vmem:[%s763 + $0x1c4] sm:$0xf]
        %v905 = vld [vmem:[%s763 + $0x1c8] sm:$0xf]
        %v906 = vld [vmem:[%s763 + $0x1cc] sm:$0xf]
        %v907 = vld [vmem:[%s763 + $0x1d0] sm:$0xf]
        %v908 = vld [vmem:[%s763 + $0x1d4] sm:$0xf]
        %v909 = vld [vmem:[%s763 + $0x1d8] sm:$0xf]
        %v910 = vld [vmem:[%s763 + $0x1dc] sm:$0xf]
        %v911 = vld [vmem:[%s763 + $0x1e0] sm:$0xf]
        %v912 = vld [vmem:[%s763 + $0x1e4] sm:$0xf]
        %v913 = vld [vmem:[%s763 + $0x1e8] sm:$0xf]
        %v914 = vld [vmem:[%s763 + $0x1ec] sm:$0xf]
        %v915 = vld [vmem:[%s763 + $0x1f0] sm:$0xf]
        %v916 = vld [vmem:[%s763 + $0x1f4] sm:$0xf]
        %v917 = vld [vmem:[%s763 + $0x1f8] sm:$0xf]
        %v918 = vld [vmem:[%s763 + $0x1fc] sm:$0xf]
        %v919 = vld [vmem:[%s1] sm:$0xf]
        %v920 = vld [vmem:[%s1 + $0x4] sm:$0xf]
        %v921 = vld [vmem:[%s1 + $0x8] sm:$0xf]
        %v922 = vld [vmem:[%s1 + $0xc] sm:$0xf]
        %v923 = vld [vmem:[%s1 + $0x10] sm:$0x3]
        %v924 = vld [vmem:[%s2] sm:$0x1]
        %v926 = vlaneseq
        %v927 = vshrl.u32 %v926, 7
        %v928 = vsub.s32 0, %v927
        %v929 = vrot.slane %v924, %v928
        %v1059 = vunpack.c.l.b16 %v791
        %v1060 = vunpack.c.l.b16 %v792
        %v1061 = vunpack.c.l.b16 %v793
        %v1062 = vunpack.c.l.b16 %v794
        %v1063 = vunpack.c.l.b16 %v795
        %v1064 = vunpack.c.l.b16 %v796
        %v1065 = vunpack.c.l.b16 %v797
        %v1066 = vunpack.c.l.b16 %v798
        %v1067 = vunpack.c.l.b16 %v799
        %v1068 = vunpack.c.l.b16 %v800
        %v1069 = vunpack.c.l.b16 %v801
        %v1070 = vunpack.c.l.b16 %v802
        %v1071 = vunpack.c.l.b16 %v803
        %v1072 = vunpack.c.l.b16 %v804
        %v1073 = vunpack.c.l.b16 %v805
        %v1074 = vunpack.c.l.b16 %v806
        %v1075 = vunpack.c.l.b16 %v807
        %v1076 = vunpack.c.l.b16 %v808
        %v1077 = vunpack.c.l.b16 %v809
        %v1078 = vunpack.c.l.b16 %v810
        %v1079 = vunpack.c.l.b16 %v811
        %v1080 = vunpack.c.l.b16 %v812
        %v1081 = vunpack.c.l.b16 %v813
        %v1082 = vunpack.c.l.b16 %v814
        %v1083 = vunpack.c.l.b16 %v815
        %v1084 = vunpack.c.l.b16 %v816
        %v1085 = vunpack.c.l.b16 %v817
        %v1086 = vunpack.c.l.b16 %v818
        %v1087 = vunpack.c.l.b16 %v819
        %v1088 = vunpack.c.l.b16 %v820
        %v1089 = vunpack.c.l.b16 %v821
        %v1090 = vunpack.c.l.b16 %v822
        %v1091 = vunpack.c.l.b16 %v823
        %v1092 = vunpack.c.l.b16 %v824
        %v1093 = vunpack.c.l.b16 %v825
        %v1094 = vunpack.c.l.b16 %v826
        %v1095 = vunpack.c.l.b16 %v827
        %v1096 = vunpack.c.l.b16 %v828
        %v1097 = vunpack.c.l.b16 %v829
        %v1098 = vunpack.c.l.b16 %v830
        %v1099 = vunpack.c.l.b16 %v831
        %v1100 = vunpack.c.l.b16 %v832
        %v1101 = vunpack.c.l.b16 %v833
        %v1102 = vunpack.c.l.b16 %v834
        %v1103 = vunpack.c.l.b16 %v835
        %v1104 = vunpack.c.l.b16 %v836
        %v1105 = vunpack.c.l.b16 %v837
        %v1106 = vunpack.c.l.b16 %v838
        %v1107 = vunpack.c.l.b16 %v839
        %v1108 = vunpack.c.l.b16 %v840
        %v1109 = vunpack.c.l.b16 %v841
        %v1110 = vunpack.c.l.b16 %v842
        %v1111 = vunpack.c.l.b16 %v843
        %v1112 = vunpack.c.l.b16 %v844
        %v1113 = vunpack.c.l.b16 %v845
        %v1114 = vunpack.c.l.b16 %v846
        %v1115 = vunpack.c.l.b16 %v847
        %v1116 = vunpack.c.l.b16 %v848
        %v1117 = vunpack.c.l.b16 %v849
        %v1118 = vunpack.c.l.b16 %v850
        %v1119 = vunpack.c.l.b16 %v851
        %v1120 = vunpack.c.l.b16 %v852
        %v1121 = vunpack.c.l.b16 %v853
        %v1122 = vunpack.c.l.b16 %v854
        %v1123 = vunpack.c.l.b16 %v855
        %v1124 = vunpack.c.l.b16 %v856
        %v1125 = vunpack.c.l.b16 %v857
        %v1126 = vunpack.c.l.b16 %v858
        %v1127 = vunpack.c.l.b16 %v859
        %v1128 = vunpack.c.l.b16 %v860
        %v1129 = vunpack.c.l.b16 %v861
        %v1130 = vunpack.c.l.b16 %v862
        %v1131 = vunpack.c.l.b16 %v863
        %v1132 = vunpack.c.l.b16 %v864
        %v1133 = vunpack.c.l.b16 %v865
        %v1134 = vunpack.c.l.b16 %v866
        %v1135 = vunpack.c.l.b16 %v867
        %v1136 = vunpack.c.l.b16 %v868
        %v1137 = vunpack.c.l.b16 %v869
        %v1138 = vunpack.c.l.b16 %v870
        %v1139 = vunpack.c.l.b16 %v871
        %v1140 = vunpack.c.l.b16 %v872
        %v1141 = vunpack.c.l.b16 %v873
        %v1142 = vunpack.c.l.b16 %v874
        %v1143 = vunpack.c.l.b16 %v875
        %v1144 = vunpack.c.l.b16 %v876
        %v1145 = vunpack.c.l.b16 %v877
        %v1146 = vunpack.c.l.b16 %v878
        %v1147 = vunpack.c.l.b16 %v879
        %v1148 = vunpack.c.l.b16 %v880
        %v1149 = vunpack.c.l.b16 %v881
        %v1150 = vunpack.c.l.b16 %v882
        %v1151 = vunpack.c.l.b16 %v883
        %v1152 = vunpack.c.l.b16 %v884
        %v1153 = vunpack.c.l.b16 %v885
        %v1154 = vunpack.c.l.b16 %v886
        %v1155 = vunpack.c.l.b16 %v887
        %v1156 = vunpack.c.l.b16 %v888
        %v1157 = vunpack.c.l.b16 %v889
        %v1158 = vunpack.c.l.b16 %v890
        %v1159 = vunpack.c.l.b16 %v891
        %v1160 = vunpack.c.l.b16 %v892
        %v1161 = vunpack.c.l.b16 %v893
        %v1162 = vunpack.c.l.b16 %v894
        %v1163 = vunpack.c.l.b16 %v895
        %v1164 = vunpack.c.l.b16 %v896
        %v1165 = vunpack.c.l.b16 %v897
        %v1166 = vunpack.c.l.b16 %v898
        %v1167 = vunpack.c.l.b16 %v899
        %v1168 = vunpack.c.l.b16 %v900
        %v1169 = vunpack.c.l.b16 %v901
        %v1170 = vunpack.c.l.b16 %v902
        %v1171 = vunpack.c.l.b16 %v903
        %v1172 = vunpack.c.l.b16 %v904
        %v1173 = vunpack.c.l.b16 %v905
        %v1174 = vunpack.c.l.b16 %v906
        %v1175 = vunpack.c.l.b16 %v907
        %v1176 = vunpack.c.l.b16 %v908
        %v1177 = vunpack.c.l.b16 %v909
        %v1178 = vunpack.c.l.b16 %v910
        %v1179 = vunpack.c.l.b16 %v911
        %v1180 = vunpack.c.l.b16 %v912
        %v1181 = vunpack.c.l.b16 %v913
        %v1182 = vunpack.c.l.b16 %v914
        %v1183 = vunpack.c.l.b16 %v915
        %v1184 = vunpack.c.l.b16 %v916
        %v1185 = vunpack.c.l.b16 %v917
        %v1186 = vunpack.c.l.b16 %v918
        %v1187 = vpack.c.b16 %v1060, %v1059
        %v1188 = vpack.c.b16 %v1062, %v1061
        %v1189 = vpack.c.b16 %v1064, %v1063
        %v1190 = vpack.c.b16 %v1066, %v1065
        %v1191 = vpack.c.b16 %v1068, %v1067
        %v1192 = vpack.c.b16 %v1070, %v1069
        %v1193 = vpack.c.b16 %v1072, %v1071
        %v1194 = vpack.c.b16 %v1074, %v1073
        %v1195 = vpack.c.b16 %v1076, %v1075
        %v1196 = vpack.c.b16 %v1078, %v1077
        %v1197 = vpack.c.b16 %v1080, %v1079
        %v1198 = vpack.c.b16 %v1082, %v1081
        %v1199 = vpack.c.b16 %v1084, %v1083
        %v1200 = vpack.c.b16 %v1086, %v1085
        %v1201 = vpack.c.b16 %v1088, %v1087
        %v1202 = vpack.c.b16 %v1090, %v1089
        %v1203 = vpack.c.b16 %v1092, %v1091
        %v1204 = vpack.c.b16 %v1094, %v1093
        %v1205 = vpack.c.b16 %v1096, %v1095
        %v1206 = vpack.c.b16 %v1098, %v1097
        %v1207 = vpack.c.b16 %v1100, %v1099
        %v1208 = vpack.c.b16 %v1102, %v1101
        %v1209 = vpack.c.b16 %v1104, %v1103
        %v1210 = vpack.c.b16 %v1106, %v1105
        %v1211 = vpack.c.b16 %v1108, %v1107
        %v1212 = vpack.c.b16 %v1110, %v1109
        %v1213 = vpack.c.b16 %v1112, %v1111
        %v1214 = vpack.c.b16 %v1114, %v1113
        %v1215 = vpack.c.b16 %v1116, %v1115
        %v1216 = vpack.c.b16 %v1118, %v1117
        %v1217 = vpack.c.b16 %v1120, %v1119
        %v1218 = vpack.c.b16 %v1122, %v1121
        %v1219 = vpack.c.b16 %v1124, %v1123
        %v1220 = vpack.c.b16 %v1126, %v1125
        %v1221 = vpack.c.b16 %v1128, %v1127
        %v1222 = vpack.c.b16 %v1130, %v1129
        %v1223 = vpack.c.b16 %v1132, %v1131
        %v1224 = vpack.c.b16 %v1134, %v1133
        %v1225 = vpack.c.b16 %v1136, %v1135
        %v1226 = vpack.c.b16 %v1138, %v1137
        %v1227 = vpack.c.b16 %v1140, %v1139
        %v1228 = vpack.c.b16 %v1142, %v1141
        %v1229 = vpack.c.b16 %v1144, %v1143
        %v1230 = vpack.c.b16 %v1146, %v1145
        %v1231 = vpack.c.b16 %v1148, %v1147
        %v1232 = vpack.c.b16 %v1150, %v1149
        %v1233 = vpack.c.b16 %v1152, %v1151
        %v1234 = vpack.c.b16 %v1154, %v1153
        %v1235 = vpack.c.b16 %v1156, %v1155
        %v1236 = vpack.c.b16 %v1158, %v1157
        %v1237 = vpack.c.b16 %v1160, %v1159
        %v1238 = vpack.c.b16 %v1162, %v1161
        %v1239 = vpack.c.b16 %v1164, %v1163
        %v1240 = vpack.c.b16 %v1166, %v1165
        %v1241 = vpack.c.b16 %v1168, %v1167
        %v1242 = vpack.c.b16 %v1170, %v1169
        %v1243 = vpack.c.b16 %v1172, %v1171
        %v1244 = vpack.c.b16 %v1174, %v1173
        %v1245 = vpack.c.b16 %v1176, %v1175
        %v1246 = vpack.c.b16 %v1178, %v1177
        %v1247 = vpack.c.b16 %v1180, %v1179
        %v1248 = vpack.c.b16 %v1182, %v1181
        %v1249 = vpack.c.b16 %v1184, %v1183
        %v1250 = vpack.c.b16 %v1186, %v1185
        %v1256 = vunpack.c.l.b16 %v919
        %v1257 = vunpack.c.l.b16 %v920
        %v1258 = vunpack.c.l.b16 %v921
        %v1259 = vunpack.c.l.b16 %v922
        %v1260 = vunpack.c.l.b16 %v923
        %v1261 = vpack.c.b16 %v1257, %v1256
        %v1262 = vpack.c.b16 %v1259, %v1258
        %v1263 = vpack.c.b16 %v1260, %v1260
        %vm1266 = vcmask 293888
        %v1268 = vsel %vm1266, %v1187, 0
        %v1271 = vsel %vm1266, %v1188, 0
        %v1274 = vsel %vm1266, %v1189, 0
        %v1277 = vsel %vm1266, %v1190, 0
        %v1280 = vsel %vm1266, %v1191, 0
        %v1283 = vsel %vm1266, %v1192, 0
        %v1286 = vsel %vm1266, %v1193, 0
        %v1289 = vsel %vm1266, %v1194, 0
        %v1292 = vsel %vm1266, %v1195, 0
        %v1295 = vsel %vm1266, %v1196, 0
        %v1298 = vsel %vm1266, %v1197, 0
        %v1301 = vsel %vm1266, %v1198, 0
        %v1304 = vsel %vm1266, %v1199, 0
        %v1307 = vsel %vm1266, %v1200, 0
        %v1310 = vsel %vm1266, %v1201, 0
        %v1313 = vsel %vm1266, %v1202, 0
        %v1316 = vsel %vm1266, %v1203, 0
        %v1319 = vsel %vm1266, %v1204, 0
        %v1322 = vsel %vm1266, %v1205, 0
        %v1325 = vsel %vm1266, %v1206, 0
        %v1328 = vsel %vm1266, %v1207, 0
        %v1331 = vsel %vm1266, %v1208, 0
        %v1334 = vsel %vm1266, %v1209, 0
        %v1337 = vsel %vm1266, %v1210, 0
        %v1340 = vsel %vm1266, %v1211, 0
        %v1343 = vsel %vm1266, %v1212, 0
        %v1346 = vsel %vm1266, %v1213, 0
        %v1349 = vsel %vm1266, %v1214, 0
        %v1352 = vsel %vm1266, %v1215, 0
        %v1355 = vsel %vm1266, %v1216, 0
        %v1358 = vsel %vm1266, %v1217, 0
        %v1361 = vsel %vm1266, %v1218, 0
        %v1364 = vsel %vm1266, %v1219, 0
        %v1367 = vsel %vm1266, %v1220, 0
        %v1370 = vsel %vm1266, %v1221, 0
        %v1373 = vsel %vm1266, %v1222, 0
        %v1376 = vsel %vm1266, %v1223, 0
        %v1379 = vsel %vm1266, %v1224, 0
        %v1382 = vsel %vm1266, %v1225, 0
        %v1385 = vsel %vm1266, %v1226, 0
        %v1388 = vsel %vm1266, %v1227, 0
        %v1391 = vsel %vm1266, %v1228, 0
        %v1394 = vsel %vm1266, %v1229, 0
        %v1397 = vsel %vm1266, %v1230, 0
        %v1400 = vsel %vm1266, %v1231, 0
        %v1403 = vsel %vm1266, %v1232, 0
        %v1406 = vsel %vm1266, %v1233, 0
        %v1409 = vsel %vm1266, %v1234, 0
        %v1412 = vsel %vm1266, %v1235, 0
        %v1415 = vsel %vm1266, %v1236, 0
        %v1418 = vsel %vm1266, %v1237, 0
        %v1421 = vsel %vm1266, %v1238, 0
        %v1424 = vsel %vm1266, %v1239, 0
        %v1427 = vsel %vm1266, %v1240, 0
        %v1430 = vsel %vm1266, %v1241, 0
        %v1433 = vsel %vm1266, %v1242, 0
        %v1436 = vsel %vm1266, %v1243, 0
        %v1439 = vsel %vm1266, %v1244, 0
        %v1442 = vsel %vm1266, %v1245, 0
        %v1445 = vsel %vm1266, %v1246, 0
        %v1448 = vsel %vm1266, %v1247, 0
        %v1451 = vsel %vm1266, %v1248, 0
        %v1454 = vsel %vm1266, %v1249, 0
        %v1457 = vsel %vm1266, %v1250, 0
        %vm1459 = vcmask 1041408
        %v1461 = vsel %vm1459, %v1263, 0
        %1463 = vmatprep.subr.bf16.mxu0 0
        %1464 = vmatpush1.bf16.msra.mxu0 %v1261
        %1465 = vmatprep.subr.bf16.mxu0 0
        %1466 = vmatpush1.bf16.msra.mxu0 %v1262
        %1467 = vmatprep.subr.bf16.mxu0 0
        %1468 = vmatpush1.bf16.msra.mxu0 %v1461
        %1469 = vmatprep.subr.bf16.mxu0 0
        %1470 = vmatpush1.bf16.msra.mxu0 0
        %1471 = vmatprep.subr.bf16.mxu0 0
        %1472 = vmatpush1.bf16.msra.mxu0 0
        %1473 = vmatprep.subr.bf16.mxu0 0
        %1474 = vmatpush1.bf16.msra.mxu0 0
        %1475 = vmatprep.subr.bf16.mxu0 0
        %1476 = vmatpush1.bf16.msra.mxu0 0
        %1477 = vmatprep.subr.bf16.mxu0 0
        %1478 = vmatpush1.bf16.msra.mxu0 0
        %1479 = vmatprep.subr.bf16.mxu0 0
        %1480 = vmatpush1.bf16.msra.mxu0 0
        %1481 = vmatprep.subr.bf16.mxu0 0
        %1482 = vmatpush1.bf16.msra.mxu0 0
        %1483 = vmatprep.subr.bf16.mxu0 0
        %1484 = vmatpush1.bf16.msra.mxu0 0
        %1485 = vmatprep.subr.bf16.mxu0 0
        %1486 = vmatpush1.bf16.msra.mxu0 0
        %1487 = vmatprep.subr.bf16.mxu0 0
        %1488 = vmatpush1.bf16.msra.mxu0 0
        %1489 = vmatprep.subr.bf16.mxu0 0
        %1490 = vmatpush1.bf16.msra.mxu0 0
        %1491 = vmatprep.subr.bf16.mxu0 0
        %1492 = vmatpush1.bf16.msra.mxu0 0
        %1493 = vmatprep.subr.bf16.mxu0 0
        %1494 = vmatpush1.bf16.msra.mxu0 0
        %1495 = vmatprep.mubr.bf16.mxu0 0
        %1496 = vmatmul.mubr.bf16.gmra.mrb[0].mxu0 %v1268
        %v1497 = vpop.f32.mrb[0].mxu0
        %v1498 = vadd.f32 %v929, %v1497
        %v1499 = vpop.f32.mrb[0].mxu0
        %v1500 = vpop.f32.mrb[0].mxu0
        %v1501 = vadd.f32 %v929, %v1500
        %v1502 = vpop.f32.mrb[0].mxu0
        %1503 = vmatprep.mubr.bf16.mxu0 0
        %1504 = vmatmul.mubr.bf16.gmra.mrb[0].mxu0 %v1271
        %v1505 = vpop.f32.mrb[0].mxu0
        %v1506 = vadd.f32 %v929, %v1505
        %v1507 = vpop.f32.mrb[0].mxu0
        %v1508 = vpop.f32.mrb[0].mxu0
        %v1509 = vadd.f32 %v929, %v1508
        %v1510 = vpop.f32.mrb[0].mxu0
        %1511 = vmatprep.mubr.bf16.mxu0 0
        %1512 = vmatmul.mubr.bf16.gmra.mrb[0].mxu0 %v1274
        %v1513 = vpop.f32.mrb[0].mxu0
        %v1514 = vadd.f32 %v929, %v1513
        %v1515 = vpop.f32.mrb[0].mxu0
        %v1516 = vpop.f32.mrb[0].mxu0
        %v1517 = vadd.f32 %v929, %v1516
        %v1518 = vpop.f32.mrb[0].mxu0
        %1519 = vmatprep.mubr.bf16.mxu0 0
        %1520 = vmatmul.mubr.bf16.gmra.mrb[0].mxu0 %v1277
        %v1521 = vpop.f32.mrb[0].mxu0
        %v1522 = vadd.f32 %v929, %v1521
        %v1523 = vpop.f32.mrb[0].mxu0
        %v1524 = vpop.f32.mrb[0].mxu0
        %v1525 = vadd.f32 %v929, %v1524
        %v1526 = vpop.f32.mrb[0].mxu0
        %1527 = vmatprep.mubr.bf16.mxu0 0
        %1528 = vmatmul.mubr.bf16.gmra.mrb[0].mxu0 %v1280
        %v1529 = vpop.f32.mrb[0].mxu0
        %v1530 = vadd.f32 %v929, %v1529
        %v1531 = vpop.f32.mrb[0].mxu0
        %v1532 = vpop.f32.mrb[0].mxu0
        %v1533 = vadd.f32 %v929, %v1532
        %v1534 = vpop.f32.mrb[0].mxu0
        %1535 = vmatprep.mubr.bf16.mxu0 0
        %1536 = vmatmul.mubr.bf16.gmra.mrb[0].mxu0 %v1283
        %v1537 = vpop.f32.mrb[0].mxu0
        %v1538 = vadd.f32 %v929, %v1537
        %v1539 = vpop.f32.mrb[0].mxu0
        %v1540 = vpop.f32.mrb[0].mxu0
        %v1541 = vadd.f32 %v929, %v1540
        %v1542 = vpop.f32.mrb[0].mxu0
        %1543 = vmatprep.mubr.bf16.mxu0 0
        %1544 = vmatmul.mubr.bf16.gmra.mrb[0].mxu0 %v1286
        %v1545 = vpop.f32.mrb[0].mxu0
        %v1546 = vadd.f32 %v929, %v1545
        %v1547 = vpop.f32.mrb[0].mxu0
        %v1548 = vpop.f32.mrb[0].mxu0
        %v1549 = vadd.f32 %v929, %v1548
        %v1550 = vpop.f32.mrb[0].mxu0
        %1551 = vmatprep.mubr.bf16.mxu0 0
        %1552 = vmatmul.mubr.bf16.gmra.mrb[0].mxu0 %v1289
        %v1553 = vpop.f32.mrb[0].mxu0
        %v1554 = vadd.f32 %v929, %v1553
        %v1555 = vpop.f32.mrb[0].mxu0
        %v1556 = vpop.f32.mrb[0].mxu0
        %v1557 = vadd.f32 %v929, %v1556
        %v1558 = vpop.f32.mrb[0].mxu0
        %1559 = vmatprep.mubr.bf16.mxu0 0
        %1560 = vmatmul.mubr.bf16.gmra.mrb[0].mxu0 %v1292
        %v1561 = vpop.f32.mrb[0].mxu0
        %v1562 = vadd.f32 %v929, %v1561
        %v1563 = vpop.f32.mrb[0].mxu0
        %v1564 = vpop.f32.mrb[0].mxu0
        %v1565 = vadd.f32 %v929, %v1564
        %v1566 = vpop.f32.mrb[0].mxu0
        %1567 = vmatprep.mubr.bf16.mxu0 0
        %1568 = vmatmul.mubr.bf16.gmra.mrb[0].mxu0 %v1295
        %v1569 = vpop.f32.mrb[0].mxu0
        %v1570 = vadd.f32 %v929, %v1569
        %v1571 = vpop.f32.mrb[0].mxu0
        %v1572 = vpop.f32.mrb[0].mxu0
        %v1573 = vadd.f32 %v929, %v1572
        %v1574 = vpop.f32.mrb[0].mxu0
        %1575 = vmatprep.mubr.bf16.mxu0 0
        %1576 = vmatmul.mubr.bf16.gmra.mrb[0].mxu0 %v1298
        %v1577 = vpop.f32.mrb[0].mxu0
        %v1578 = vadd.f32 %v929, %v1577
        %v1579 = vpop.f32.mrb[0].mxu0
        %v1580 = vpop.f32.mrb[0].mxu0
        %v1581 = vadd.f32 %v929, %v1580
        %v1582 = vpop.f32.mrb[0].mxu0
        %1583 = vmatprep.mubr.bf16.mxu0 0
        %1584 = vmatmul.mubr.bf16.gmra.mrb[0].mxu0 %v1301
        %v1585 = vpop.f32.mrb[0].mxu0
        %v1586 = vadd.f32 %v929, %v1585
        %v1587 = vpop.f32.mrb[0].mxu0
        %v1588 = vpop.f32.mrb[0].mxu0
        %v1589 = vadd.f32 %v929, %v1588
        %v1590 = vpop.f32.mrb[0].mxu0
        %1591 = vmatprep.mubr.bf16.mxu0 0
        %1592 = vmatmul.mubr.bf16.gmra.mrb[0].mxu0 %v1304
        %v1593 = vpop.f32.mrb[0].mxu0
        %v1594 = vadd.f32 %v929, %v1593
        %v1595 = vpop.f32.mrb[0].mxu0
        %v1596 = vpop.f32.mrb[0].mxu0
        %v1597 = vadd.f32 %v929, %v1596
        %v1598 = vpop.f32.mrb[0].mxu0
        %1599 = vmatprep.mubr.bf16.mxu0 0
        %1600 = vmatmul.mubr.bf16.gmra.mrb[0].mxu0 %v1307
        %v1601 = vpop.f32.mrb[0].mxu0
        %v1602 = vadd.f32 %v929, %v1601
        %v1603 = vpop.f32.mrb[0].mxu0
        %v1604 = vpop.f32.mrb[0].mxu0
        %v1605 = vadd.f32 %v929, %v1604
        %v1606 = vpop.f32.mrb[0].mxu0
        %1607 = vmatprep.mubr.bf16.mxu0 0
        %1608 = vmatmul.mubr.bf16.gmra.mrb[0].mxu0 %v1310
        %v1609 = vpop.f32.mrb[0].mxu0
        %v1610 = vadd.f32 %v929, %v1609
        %v1611 = vpop.f32.mrb[0].mxu0
        %v1612 = vpop.f32.mrb[0].mxu0
        %v1613 = vadd.f32 %v929, %v1612
        %v1614 = vpop.f32.mrb[0].mxu0
        %1615 = vmatprep.mubr.bf16.mxu0 0
        %1616 = vmatmul.mubr.bf16.gmra.mrb[0].mxu0 %v1313
        %v1617 = vpop.f32.mrb[0].mxu0
        %v1618 = vadd.f32 %v929, %v1617
        %v1619 = vpop.f32.mrb[0].mxu0
        %v1620 = vpop.f32.mrb[0].mxu0
        %v1621 = vadd.f32 %v929, %v1620
        %v1622 = vpop.f32.mrb[0].mxu0
        %1623 = vmatprep.mubr.bf16.mxu0 0
        %1624 = vmatmul.mubr.bf16.gmra.mrb[0].mxu0 %v1316
        %v1625 = vpop.f32.mrb[0].mxu0
        %v1626 = vadd.f32 %v929, %v1625
        %v1627 = vpop.f32.mrb[0].mxu0
        %v1628 = vpop.f32.mrb[0].mxu0
        %v1629 = vadd.f32 %v929, %v1628
        %v1630 = vpop.f32.mrb[0].mxu0
        %1631 = vmatprep.mubr.bf16.mxu0 0
        %1632 = vmatmul.mubr.bf16.gmra.mrb[0].mxu0 %v1319
        %v1633 = vpop.f32.mrb[0].mxu0
        %v1634 = vadd.f32 %v929, %v1633
        %v1635 = vpop.f32.mrb[0].mxu0
        %v1636 = vpop.f32.mrb[0].mxu0
        %v1637 = vadd.f32 %v929, %v1636
        %v1638 = vpop.f32.mrb[0].mxu0
        %1639 = vmatprep.mubr.bf16.mxu0 0
        %1640 = vmatmul.mubr.bf16.gmra.mrb[0].mxu0 %v1322
        %v1641 = vpop.f32.mrb[0].mxu0
        %v1642 = vadd.f32 %v929, %v1641
        %v1643 = vpop.f32.mrb[0].mxu0
        %v1644 = vpop.f32.mrb[0].mxu0
        %v1645 = vadd.f32 %v929, %v1644
        %v1646 = vpop.f32.mrb[0].mxu0
        %1647 = vmatprep.mubr.bf16.mxu0 0
        %1648 = vmatmul.mubr.bf16.gmra.mrb[0].mxu0 %v1325
        %v1649 = vpop.f32.mrb[0].mxu0
        %v1650 = vadd.f32 %v929, %v1649
        %v1651 = vpop.f32.mrb[0].mxu0
        %v1652 = vpop.f32.mrb[0].mxu0
        %v1653 = vadd.f32 %v929, %v1652
        %v1654 = vpop.f32.mrb[0].mxu0
        %1655 = vmatprep.mubr.bf16.mxu0 0
        %1656 = vmatmul.mubr.bf16.gmra.mrb[0].mxu0 %v1328
        %v1657 = vpop.f32.mrb[0].mxu0
        %v1658 = vadd.f32 %v929, %v1657
        %v1659 = vpop.f32.mrb[0].mxu0
        %v1660 = vpop.f32.mrb[0].mxu0
        %v1661 = vadd.f32 %v929, %v1660
        %v1662 = vpop.f32.mrb[0].mxu0
        %1663 = vmatprep.mubr.bf16.mxu0 0
        %1664 = vmatmul.mubr.bf16.gmra.mrb[0].mxu0 %v1331
        %v1665 = vpop.f32.mrb[0].mxu0
        %v1666 = vadd.f32 %v929, %v1665
        %v1667 = vpop.f32.mrb[0].mxu0
        %v1668 = vpop.f32.mrb[0].mxu0
        %v1669 = vadd.f32 %v929, %v1668
        %v1670 = vpop.f32.mrb[0].mxu0
        %1671 = vmatprep.mubr.bf16.mxu0 0
        %1672 = vmatmul.mubr.bf16.gmra.mrb[0].mxu0 %v1334
        %v1673 = vpop.f32.mrb[0].mxu0
        %v1674 = vadd.f32 %v929, %v1673
        %v1675 = vpop.f32.mrb[0].mxu0
        %v1676 = vpop.f32.mrb[0].mxu0
        %v1677 = vadd.f32 %v929, %v1676
        %v1678 = vpop.f32.mrb[0].mxu0
        %1679 = vmatprep.mubr.bf16.mxu0 0
        %1680 = vmatmul.mubr.bf16.gmra.mrb[0].mxu0 %v1337
        %v1681 = vpop.f32.mrb[0].mxu0
        %v1682 = vadd.f32 %v929, %v1681
        %v1683 = vpop.f32.mrb[0].mxu0
        %v1684 = vpop.f32.mrb[0].mxu0
        %v1685 = vadd.f32 %v929, %v1684
        %v1686 = vpop.f32.mrb[0].mxu0
        %1687 = vmatprep.mubr.bf16.mxu0 0
        %1688 = vmatmul.mubr.bf16.gmra.mrb[0].mxu0 %v1340
        %v1689 = vpop.f32.mrb[0].mxu0
        %v1690 = vadd.f32 %v929, %v1689
        %v1691 = vpop.f32.mrb[0].mxu0
        %v1692 = vpop.f32.mrb[0].mxu0
        %v1693 = vadd.f32 %v929, %v1692
        %v1694 = vpop.f32.mrb[0].mxu0
        %1695 = vmatprep.mubr.bf16.mxu0 0
        %1696 = vmatmul.mubr.bf16.gmra.mrb[0].mxu0 %v1343
        %v1697 = vpop.f32.mrb[0].mxu0
        %v1698 = vadd.f32 %v929, %v1697
        %v1699 = vpop.f32.mrb[0].mxu0
        %v1700 = vpop.f32.mrb[0].mxu0
        %v1701 = vadd.f32 %v929, %v1700
        %v1702 = vpop.f32.mrb[0].mxu0
        %1703 = vmatprep.mubr.bf16.mxu0 0
        %1704 = vmatmul.mubr.bf16.gmra.mrb[0].mxu0 %v1346
        %v1705 = vpop.f32.mrb[0].mxu0
        %v1706 = vadd.f32 %v929, %v1705
        %v1707 = vpop.f32.mrb[0].mxu0
        %v1708 = vpop.f32.mrb[0].mxu0
        %v1709 = vadd.f32 %v929, %v1708
        %v1710 = vpop.f32.mrb[0].mxu0
        %1711 = vmatprep.mubr.bf16.mxu0 0
        %1712 = vmatmul.mubr.bf16.gmra.mrb[0].mxu0 %v1349
        %v1713 = vpop.f32.mrb[0].mxu0
        %v1714 = vadd.f32 %v929, %v1713
        %v1715 = vpop.f32.mrb[0].mxu0
        %v1716 = vpop.f32.mrb[0].mxu0
        %v1717 = vadd.f32 %v929, %v1716
        %v1718 = vpop.f32.mrb[0].mxu0
        %1719 = vmatprep.mubr.bf16.mxu0 0
        %1720 = vmatmul.mubr.bf16.gmra.mrb[0].mxu0 %v1352
        %v1721 = vpop.f32.mrb[0].mxu0
        %v1722 = vadd.f32 %v929, %v1721
        %v1723 = vpop.f32.mrb[0].mxu0
        %v1724 = vpop.f32.mrb[0].mxu0
        %v1725 = vadd.f32 %v929, %v1724
        %v1726 = vpop.f32.mrb[0].mxu0
        %1727 = vmatprep.mubr.bf16.mxu0 0
        %1728 = vmatmul.mubr.bf16.gmra.mrb[0].mxu0 %v1355
        %v1729 = vpop.f32.mrb[0].mxu0
        %v1730 = vadd.f32 %v929, %v1729
        %v1731 = vpop.f32.mrb[0].mxu0
        %v1732 = vpop.f32.mrb[0].mxu0
        %v1733 = vadd.f32 %v929, %v1732
        %v1734 = vpop.f32.mrb[0].mxu0
        %1735 = vmatprep.mubr.bf16.mxu0 0
        %1736 = vmatmul.mubr.bf16.gmra.mrb[0].mxu0 %v1358
        %v1737 = vpop.f32.mrb[0].mxu0
        %v1738 = vadd.f32 %v929, %v1737
        %v1739 = vpop.f32.mrb[0].mxu0
        %v1740 = vpop.f32.mrb[0].mxu0
        %v1741 = vadd.f32 %v929, %v1740
        %v1742 = vpop.f32.mrb[0].mxu0
        %1743 = vmatprep.mubr.bf16.mxu0 0
        %1744 = vmatmul.mubr.bf16.gmra.mrb[0].mxu0 %v1361
        %v1745 = vpop.f32.mrb[0].mxu0
        %v1746 = vadd.f32 %v929, %v1745
        %v1747 = vpop.f32.mrb[0].mxu0
        %v1748 = vpop.f32.mrb[0].mxu0
        %v1749 = vadd.f32 %v929, %v1748
        %v1750 = vpop.f32.mrb[0].mxu0
        %1751 = vmatprep.mubr.bf16.mxu0 0
        %1752 = vmatmul.mubr.bf16.gmra.mrb[0].mxu0 %v1364
        %v1753 = vpop.f32.mrb[0].mxu0
        %v1754 = vadd.f32 %v929, %v1753
        %v1755 = vpop.f32.mrb[0].mxu0
        %v1756 = vpop.f32.mrb[0].mxu0
        %v1757 = vadd.f32 %v929, %v1756
        %v1758 = vpop.f32.mrb[0].mxu0
        %1759 = vmatprep.mubr.bf16.mxu0 0
        %1760 = vmatmul.mubr.bf16.gmra.mrb[0].mxu0 %v1367
        %v1761 = vpop.f32.mrb[0].mxu0
        %v1762 = vadd.f32 %v929, %v1761
        %v1763 = vpop.f32.mrb[0].mxu0
        %v1764 = vpop.f32.mrb[0].mxu0
        %v1765 = vadd.f32 %v929, %v1764
        %v1766 = vpop.f32.mrb[0].mxu0
        %1767 = vmatprep.mubr.bf16.mxu0 0
        %1768 = vmatmul.mubr.bf16.gmra.mrb[0].mxu0 %v1370
        %v1769 = vpop.f32.mrb[0].mxu0
        %v1770 = vadd.f32 %v929, %v1769
        %v1771 = vpop.f32.mrb[0].mxu0
        %v1772 = vpop.f32.mrb[0].mxu0
        %v1773 = vadd.f32 %v929, %v1772
        %v1774 = vpop.f32.mrb[0].mxu0
        %1775 = vmatprep.mubr.bf16.mxu0 0
        %1776 = vmatmul.mubr.bf16.gmra.mrb[0].mxu0 %v1373
        %v1777 = vpop.f32.mrb[0].mxu0
        %v1778 = vadd.f32 %v929, %v1777
        %v1779 = vpop.f32.mrb[0].mxu0
        %v1780 = vpop.f32.mrb[0].mxu0
        %v1781 = vadd.f32 %v929, %v1780
        %v1782 = vpop.f32.mrb[0].mxu0
        %1783 = vmatprep.mubr.bf16.mxu0 0
        %1784 = vmatmul.mubr.bf16.gmra.mrb[0].mxu0 %v1376
        %v1785 = vpop.f32.mrb[0].mxu0
        %v1786 = vadd.f32 %v929, %v1785
        %v1787 = vpop.f32.mrb[0].mxu0
        %v1788 = vpop.f32.mrb[0].mxu0
        %v1789 = vadd.f32 %v929, %v1788
        %v1790 = vpop.f32.mrb[0].mxu0
        %1791 = vmatprep.mubr.bf16.mxu0 0
        %1792 = vmatmul.mubr.bf16.gmra.mrb[0].mxu0 %v1379
        %v1793 = vpop.f32.mrb[0].mxu0
        %v1794 = vadd.f32 %v929, %v1793
        %v1795 = vpop.f32.mrb[0].mxu0
        %v1796 = vpop.f32.mrb[0].mxu0
        %v1797 = vadd.f32 %v929, %v1796
        %v1798 = vpop.f32.mrb[0].mxu0
        %1799 = vmatprep.mubr.bf16.mxu0 0
        %1800 = vmatmul.mubr.bf16.gmra.mrb[0].mxu0 %v1382
        %v1801 = vpop.f32.mrb[0].mxu0
        %v1802 = vadd.f32 %v929, %v1801
        %v1803 = vpop.f32.mrb[0].mxu0
        %v1804 = vpop.f32.mrb[0].mxu0
        %v1805 = vadd.f32 %v929, %v1804
        %v1806 = vpop.f32.mrb[0].mxu0
        %1807 = vmatprep.mubr.bf16.mxu0 0
        %1808 = vmatmul.mubr.bf16.gmra.mrb[0].mxu0 %v1385
        %v1809 = vpop.f32.mrb[0].mxu0
        %v1810 = vadd.f32 %v929, %v1809
        %v1811 = vpop.f32.mrb[0].mxu0
        %v1812 = vpop.f32.mrb[0].mxu0
        %v1813 = vadd.f32 %v929, %v1812
        %v1814 = vpop.f32.mrb[0].mxu0
        %1815 = vmatprep.mubr.bf16.mxu0 0
        %1816 = vmatmul.mubr.bf16.gmra.mrb[0].mxu0 %v1388
        %v1817 = vpop.f32.mrb[0].mxu0
        %v1818 = vadd.f32 %v929, %v1817
        %v1819 = vpop.f32.mrb[0].mxu0
        %v1820 = vpop.f32.mrb[0].mxu0
        %v1821 = vadd.f32 %v929, %v1820
        %v1822 = vpop.f32.mrb[0].mxu0
        %1823 = vmatprep.mubr.bf16.mxu0 0
        %1824 = vmatmul.mubr.bf16.gmra.mrb[0].mxu0 %v1391
        %v1825 = vpop.f32.mrb[0].mxu0
        %v1826 = vadd.f32 %v929, %v1825
        %v1827 = vpop.f32.mrb[0].mxu0
        %v1828 = vpop.f32.mrb[0].mxu0
        %v1829 = vadd.f32 %v929, %v1828
        %v1830 = vpop.f32.mrb[0].mxu0
        %1831 = vmatprep.mubr.bf16.mxu0 0
        %1832 = vmatmul.mubr.bf16.gmra.mrb[0].mxu0 %v1394
        %v1833 = vpop.f32.mrb[0].mxu0
        %v1834 = vadd.f32 %v929, %v1833
        %v1835 = vpop.f32.mrb[0].mxu0
        %v1836 = vpop.f32.mrb[0].mxu0
        %v1837 = vadd.f32 %v929, %v1836
        %v1838 = vpop.f32.mrb[0].mxu0
        %1839 = vmatprep.mubr.bf16.mxu0 0
        %1840 = vmatmul.mubr.bf16.gmra.mrb[0].mxu0 %v1397
        %v1841 = vpop.f32.mrb[0].mxu0
        %v1842 = vadd.f32 %v929, %v1841
        %v1843 = vpop.f32.mrb[0].mxu0
        %v1844 = vpop.f32.mrb[0].mxu0
        %v1845 = vadd.f32 %v929, %v1844
        %v1846 = vpop.f32.mrb[0].mxu0
        %1847 = vmatprep.mubr.bf16.mxu0 0
        %1848 = vmatmul.mubr.bf16.gmra.mrb[0].mxu0 %v1400
        %v1849 = vpop.f32.mrb[0].mxu0
        %v1850 = vadd.f32 %v929, %v1849
        %v1851 = vpop.f32.mrb[0].mxu0
        %v1852 = vpop.f32.mrb[0].mxu0
        %v1853 = vadd.f32 %v929, %v1852
        %v1854 = vpop.f32.mrb[0].mxu0
        %1855 = vmatprep.mubr.bf16.mxu0 0
        %1856 = vmatmul.mubr.bf16.gmra.mrb[0].mxu0 %v1403
        %v1857 = vpop.f32.mrb[0].mxu0
        %v1858 = vadd.f32 %v929, %v1857
        %v1859 = vpop.f32.mrb[0].mxu0
        %v1860 = vpop.f32.mrb[0].mxu0
        %v1861 = vadd.f32 %v929, %v1860
        %v1862 = vpop.f32.mrb[0].mxu0
        %1863 = vmatprep.mubr.bf16.mxu0 0
        %1864 = vmatmul.mubr.bf16.gmra.mrb[0].mxu0 %v1406
        %v1865 = vpop.f32.mrb[0].mxu0
        %v1866 = vadd.f32 %v929, %v1865
        %v1867 = vpop.f32.mrb[0].mxu0
        %v1868 = vpop.f32.mrb[0].mxu0
        %v1869 = vadd.f32 %v929, %v1868
        %v1870 = vpop.f32.mrb[0].mxu0
        %1871 = vmatprep.mubr.bf16.mxu0 0
        %1872 = vmatmul.mubr.bf16.gmra.mrb[0].mxu0 %v1409
        %v1873 = vpop.f32.mrb[0].mxu0
        %v1874 = vadd.f32 %v929, %v1873
        %v1875 = vpop.f32.mrb[0].mxu0
        %v1876 = vpop.f32.mrb[0].mxu0
        %v1877 = vadd.f32 %v929, %v1876
        %v1878 = vpop.f32.mrb[0].mxu0
        %1879 = vmatprep.mubr.bf16.mxu0 0
        %1880 = vmatmul.mubr.bf16.gmra.mrb[0].mxu0 %v1412
        %v1881 = vpop.f32.mrb[0].mxu0
        %v1882 = vadd.f32 %v929, %v1881
        %v1883 = vpop.f32.mrb[0].mxu0
        %v1884 = vpop.f32.mrb[0].mxu0
        %v1885 = vadd.f32 %v929, %v1884
        %v1886 = vpop.f32.mrb[0].mxu0
        %1887 = vmatprep.mubr.bf16.mxu0 0
        %1888 = vmatmul.mubr.bf16.gmra.mrb[0].mxu0 %v1415
        %v1889 = vpop.f32.mrb[0].mxu0
        %v1890 = vadd.f32 %v929, %v1889
        %v1891 = vpop.f32.mrb[0].mxu0
        %v1892 = vpop.f32.mrb[0].mxu0
        %v1893 = vadd.f32 %v929, %v1892
        %v1894 = vpop.f32.mrb[0].mxu0
        %1895 = vmatprep.mubr.bf16.mxu0 0
        %1896 = vmatmul.mubr.bf16.gmra.mrb[0].mxu0 %v1418
        %v1897 = vpop.f32.mrb[0].mxu0
        %v1898 = vadd.f32 %v929, %v1897
        %v1899 = vpop.f32.mrb[0].mxu0
        %v1900 = vpop.f32.mrb[0].mxu0
        %v1901 = vadd.f32 %v929, %v1900
        %v1902 = vpop.f32.mrb[0].mxu0
        %1903 = vmatprep.mubr.bf16.mxu0 0
        %1904 = vmatmul.mubr.bf16.gmra.mrb[0].mxu0 %v1421
        %v1905 = vpop.f32.mrb[0].mxu0
        %v1906 = vadd.f32 %v929, %v1905
        %v1907 = vpop.f32.mrb[0].mxu0
        %v1908 = vpop.f32.mrb[0].mxu0
        %v1909 = vadd.f32 %v929, %v1908
        %v1910 = vpop.f32.mrb[0].mxu0
        %1911 = vmatprep.mubr.bf16.mxu0 0
        %1912 = vmatmul.mubr.bf16.gmra.mrb[0].mxu0 %v1424
        %v1913 = vpop.f32.mrb[0].mxu0
        %v1914 = vadd.f32 %v929, %v1913
        %v1915 = vpop.f32.mrb[0].mxu0
        %v1916 = vpop.f32.mrb[0].mxu0
        %v1917 = vadd.f32 %v929, %v1916
        %v1918 = vpop.f32.mrb[0].mxu0
        %1919 = vmatprep.mubr.bf16.mxu0 0
        %1920 = vmatmul.mubr.bf16.gmra.mrb[0].mxu0 %v1427
        %v1921 = vpop.f32.mrb[0].mxu0
        %v1922 = vadd.f32 %v929, %v1921
        %v1923 = vpop.f32.mrb[0].mxu0
        %v1924 = vpop.f32.mrb[0].mxu0
        %v1925 = vadd.f32 %v929, %v1924
        %v1926 = vpop.f32.mrb[0].mxu0
        %1927 = vmatprep.mubr.bf16.mxu0 0
        %1928 = vmatmul.mubr.bf16.gmra.mrb[0].mxu0 %v1430
        %v1929 = vpop.f32.mrb[0].mxu0
        %v1930 = vadd.f32 %v929, %v1929
        %v1931 = vpop.f32.mrb[0].mxu0
        %v1932 = vpop.f32.mrb[0].mxu0
        %v1933 = vadd.f32 %v929, %v1932
        %v1934 = vpop.f32.mrb[0].mxu0
        %1935 = vmatprep.mubr.bf16.mxu0 0
        %1936 = vmatmul.mubr.bf16.gmra.mrb[0].mxu0 %v1433
        %v1937 = vpop.f32.mrb[0].mxu0
        %v1938 = vadd.f32 %v929, %v1937
        %v1939 = vpop.f32.mrb[0].mxu0
        %v1940 = vpop.f32.mrb[0].mxu0
        %v1941 = vadd.f32 %v929, %v1940
        %v1942 = vpop.f32.mrb[0].mxu0
        %1943 = vmatprep.mubr.bf16.mxu0 0
        %1944 = vmatmul.mubr.bf16.gmra.mrb[0].mxu0 %v1436
        %v1945 = vpop.f32.mrb[0].mxu0
        %v1946 = vadd.f32 %v929, %v1945
        %v1947 = vpop.f32.mrb[0].mxu0
        %v1948 = vpop.f32.mrb[0].mxu0
        %v1949 = vadd.f32 %v929, %v1948
        %v1950 = vpop.f32.mrb[0].mxu0
        %1951 = vmatprep.mubr.bf16.mxu0 0
        %1952 = vmatmul.mubr.bf16.gmra.mrb[0].mxu0 %v1439
        %v1953 = vpop.f32.mrb[0].mxu0
        %v1954 = vadd.f32 %v929, %v1953
        %v1955 = vpop.f32.mrb[0].mxu0
        %v1956 = vpop.f32.mrb[0].mxu0
        %v1957 = vadd.f32 %v929, %v1956
        %v1958 = vpop.f32.mrb[0].mxu0
        %1959 = vmatprep.mubr.bf16.mxu0 0
        %1960 = vmatmul.mubr.bf16.gmra.mrb[0].mxu0 %v1442
        %v1961 = vpop.f32.mrb[0].mxu0
        %v1962 = vadd.f32 %v929, %v1961
        %v1963 = vpop.f32.mrb[0].mxu0
        %v1964 = vpop.f32.mrb[0].mxu0
        %v1965 = vadd.f32 %v929, %v1964
        %v1966 = vpop.f32.mrb[0].mxu0
        %1967 = vmatprep.mubr.bf16.mxu0 0
        %1968 = vmatmul.mubr.bf16.gmra.mrb[0].mxu0 %v1445
        %v1969 = vpop.f32.mrb[0].mxu0
        %v1970 = vadd.f32 %v929, %v1969
        %v1971 = vpop.f32.mrb[0].mxu0
        %v1972 = vpop.f32.mrb[0].mxu0
        %v1973 = vadd.f32 %v929, %v1972
        %v1974 = vpop.f32.mrb[0].mxu0
        %1975 = vmatprep.mubr.bf16.mxu0 0
        %1976 = vmatmul.mubr.bf16.gmra.mrb[0].mxu0 %v1448
        %v1977 = vpop.f32.mrb[0].mxu0
        %v1978 = vadd.f32 %v929, %v1977
        %v1979 = vpop.f32.mrb[0].mxu0
        %v1980 = vpop.f32.mrb[0].mxu0
        %v1981 = vadd.f32 %v929, %v1980
        %v1982 = vpop.f32.mrb[0].mxu0
        %1983 = vmatprep.mubr.bf16.mxu0 0
        %1984 = vmatmul.mubr.bf16.gmra.mrb[0].mxu0 %v1451
        %v1985 = vpop.f32.mrb[0].mxu0
        %v1986 = vadd.f32 %v929, %v1985
        %v1987 = vpop.f32.mrb[0].mxu0
        %v1988 = vpop.f32.mrb[0].mxu0
        %v1989 = vadd.f32 %v929, %v1988
        %v1990 = vpop.f32.mrb[0].mxu0
        %1991 = vmatprep.mubr.bf16.mxu0 0
        %1992 = vmatmul.mubr.bf16.gmra.mrb[0].mxu0 %v1454
        %v1993 = vpop.f32.mrb[0].mxu0
        %v1994 = vadd.f32 %v929, %v1993
        %v1995 = vpop.f32.mrb[0].mxu0
        %v1996 = vpop.f32.mrb[0].mxu0
        %v1997 = vadd.f32 %v929, %v1996
        %v1998 = vpop.f32.mrb[0].mxu0
        %1999 = vmatprep.mubr.bf16.mxu0 0
        %2000 = vmatmul.mubr.bf16.gmra.mrb[0].mxu0 %v1457
        %v2001 = vpop.f32.mrb[0].mxu0
        %v2002 = vadd.f32 %v929, %v2001
        %v2003 = vpop.f32.mrb[0].mxu0
        %v2004 = vpop.f32.mrb[0].mxu0
        %v2005 = vadd.f32 %v929, %v2004
        %v2006 = vpop.f32.mrb[0].mxu0
        %2007 = vdwg.mxu0
        %v2008 = vmax.f32 %v1498, 0.0
        %v2009 = vmax.f32 %v1501, 0.0
        %v2010 = vmax.f32 %v1506, 0.0
        %v2011 = vmax.f32 %v1509, 0.0
        %v2012 = vmax.f32 %v1514, 0.0
        %v2013 = vmax.f32 %v1517, 0.0
        %v2014 = vmax.f32 %v1522, 0.0
        %v2015 = vmax.f32 %v1525, 0.0
        %v2016 = vmax.f32 %v1530, 0.0
        %v2017 = vmax.f32 %v1533, 0.0
        %v2018 = vmax.f32 %v1538, 0.0
        %v2019 = vmax.f32 %v1541, 0.0
        %v2020 = vmax.f32 %v1546, 0.0
        %v2021 = vmax.f32 %v1549, 0.0
        %v2022 = vmax.f32 %v1554, 0.0
        %v2023 = vmax.f32 %v1557, 0.0
        %v2024 = vmax.f32 %v1562, 0.0
        %v2025 = vmax.f32 %v1565, 0.0
        %v2026 = vmax.f32 %v1570, 0.0
        %v2027 = vmax.f32 %v1573, 0.0
        %v2028 = vmax.f32 %v1578, 0.0
        %v2029 = vmax.f32 %v1581, 0.0
        %v2030 = vmax.f32 %v1586, 0.0
        %v2031 = vmax.f32 %v1589, 0.0
        %v2032 = vmax.f32 %v1594, 0.0
        %v2033 = vmax.f32 %v1597, 0.0
        %v2034 = vmax.f32 %v1602, 0.0
        %v2035 = vmax.f32 %v1605, 0.0
        %v2036 = vmax.f32 %v1610, 0.0
        %v2037 = vmax.f32 %v1613, 0.0
        %v2038 = vmax.f32 %v1618, 0.0
        %v2039 = vmax.f32 %v1621, 0.0
        %v2040 = vmax.f32 %v1626, 0.0
        %v2041 = vmax.f32 %v1629, 0.0
        %v2042 = vmax.f32 %v1634, 0.0
        %v2043 = vmax.f32 %v1637, 0.0
        %v2044 = vmax.f32 %v1642, 0.0
        %v2045 = vmax.f32 %v1645, 0.0
        %v2046 = vmax.f32 %v1650, 0.0
        %v2047 = vmax.f32 %v1653, 0.0
        %v2048 = vmax.f32 %v1658, 0.0
        %v2049 = vmax.f32 %v1661, 0.0
        %v2050 = vmax.f32 %v1666, 0.0
        %v2051 = vmax.f32 %v1669, 0.0
        %v2052 = vmax.f32 %v1674, 0.0
        %v2053 = vmax.f32 %v1677, 0.0
        %v2054 = vmax.f32 %v1682, 0.0
        %v2055 = vmax.f32 %v1685, 0.0
        %v2056 = vmax.f32 %v1690, 0.0
        %v2057 = vmax.f32 %v1693, 0.0
        %v2058 = vmax.f32 %v1698, 0.0
        %v2059 = vmax.f32 %v1701, 0.0
        %v2060 = vmax.f32 %v1706, 0.0
        %v2061 = vmax.f32 %v1709, 0.0
        %v2062 = vmax.f32 %v1714, 0.0
        %v2063 = vmax.f32 %v1717, 0.0
        %v2064 = vmax.f32 %v1722, 0.0
        %v2065 = vmax.f32 %v1725, 0.0
        %v2066 = vmax.f32 %v1730, 0.0
        %v2067 = vmax.f32 %v1733, 0.0
        %v2068 = vmax.f32 %v1738, 0.0
        %v2069 = vmax.f32 %v1741, 0.0
        %v2070 = vmax.f32 %v1746, 0.0
        %v2071 = vmax.f32 %v1749, 0.0
        %v2072 = vmax.f32 %v1754, 0.0
        %v2073 = vmax.f32 %v1757, 0.0
        %v2074 = vmax.f32 %v1762, 0.0
        %v2075 = vmax.f32 %v1765, 0.0
        %v2076 = vmax.f32 %v1770, 0.0
        %v2077 = vmax.f32 %v1773, 0.0
        %v2078 = vmax.f32 %v1778, 0.0
        %v2079 = vmax.f32 %v1781, 0.0
        %v2080 = vmax.f32 %v1786, 0.0
        %v2081 = vmax.f32 %v1789, 0.0
        %v2082 = vmax.f32 %v1794, 0.0
        %v2083 = vmax.f32 %v1797, 0.0
        %v2084 = vmax.f32 %v1802, 0.0
        %v2085 = vmax.f32 %v1805, 0.0
        %v2086 = vmax.f32 %v1810, 0.0
        %v2087 = vmax.f32 %v1813, 0.0
        %v2088 = vmax.f32 %v1818, 0.0
        %v2089 = vmax.f32 %v1821, 0.0
        %v2090 = vmax.f32 %v1826, 0.0
        %v2091 = vmax.f32 %v1829, 0.0
        %v2092 = vmax.f32 %v1834, 0.0
        %v2093 = vmax.f32 %v1837, 0.0
        %v2094 = vmax.f32 %v1842, 0.0
        %v2095 = vmax.f32 %v1845, 0.0
        %v2096 = vmax.f32 %v1850, 0.0
        %v2097 = vmax.f32 %v1853, 0.0
        %v2098 = vmax.f32 %v1858, 0.0
        %v2099 = vmax.f32 %v1861, 0.0
        %v2100 = vmax.f32 %v1866, 0.0
        %v2101 = vmax.f32 %v1869, 0.0
        %v2102 = vmax.f32 %v1874, 0.0
        %v2103 = vmax.f32 %v1877, 0.0
        %v2104 = vmax.f32 %v1882, 0.0
        %v2105 = vmax.f32 %v1885, 0.0
        %v2106 = vmax.f32 %v1890, 0.0
        %v2107 = vmax.f32 %v1893, 0.0
        %v2108 = vmax.f32 %v1898, 0.0
        %v2109 = vmax.f32 %v1901, 0.0
        %v2110 = vmax.f32 %v1906, 0.0
        %v2111 = vmax.f32 %v1909, 0.0
        %v2112 = vmax.f32 %v1914, 0.0
        %v2113 = vmax.f32 %v1917, 0.0
        %v2114 = vmax.f32 %v1922, 0.0
        %v2115 = vmax.f32 %v1925, 0.0
        %v2116 = vmax.f32 %v1930, 0.0
        %v2117 = vmax.f32 %v1933, 0.0
        %v2118 = vmax.f32 %v1938, 0.0
        %v2119 = vmax.f32 %v1941, 0.0
        %v2120 = vmax.f32 %v1946, 0.0
        %v2121 = vmax.f32 %v1949, 0.0
        %v2122 = vmax.f32 %v1954, 0.0
        %v2123 = vmax.f32 %v1957, 0.0
        %v2124 = vmax.f32 %v1962, 0.0
        %v2125 = vmax.f32 %v1965, 0.0
        %v2126 = vmax.f32 %v1970, 0.0
        %v2127 = vmax.f32 %v1973, 0.0
        %v2128 = vmax.f32 %v1978, 0.0
        %v2129 = vmax.f32 %v1981, 0.0
        %v2130 = vmax.f32 %v1986, 0.0
        %v2131 = vmax.f32 %v1989, 0.0
        %v2132 = vmax.f32 %v1994, 0.0
        %v2133 = vmax.f32 %v1997, 0.0
        %v2134 = vmax.f32 %v2002, 0.0
        %v2135 = vmax.f32 %v2005, 0.0
        %v2136 = vld [vmem:[#allocation2] sm:$0xff]
        %v2137 = vadd.f32 %v2008, %v2009
        %v2138 = vadd.f32 %v2137, %v2010
        %v2139 = vadd.f32 %v2138, %v2011
        %v2140 = vadd.f32 %v2139, %v2012
        %v2141 = vadd.f32 %v2140, %v2013
        %v2142 = vadd.f32 %v2141, %v2014
        %v2143 = vadd.f32 %v2142, %v2015
        %v2144 = vadd.f32 %v2143, %v2016
        %v2145 = vadd.f32 %v2144, %v2017
        %v2146 = vadd.f32 %v2145, %v2018
        %v2147 = vadd.f32 %v2146, %v2019
        %v2148 = vadd.f32 %v2147, %v2020
        %v2149 = vadd.f32 %v2148, %v2021
        %v2150 = vadd.f32 %v2149, %v2022
        %v2151 = vadd.f32 %v2150, %v2023
        %v2152 = vrot.slane %v2151, 4
        %v2153 = vadd.f32 %v2151, %v2152
        %v2154 = vrot.slane %v2153, 2
        %v2155 = vadd.f32 %v2153, %v2154
        %v2156 = vrot.slane %v2155, 1
        %v2157 = vadd.f32 %v2155, %v2156
        %v2158 = vadd.f32 %v2024, %v2025
        %v2159 = vadd.f32 %v2158, %v2026
        %v2160 = vadd.f32 %v2159, %v2027
        %v2161 = vadd.f32 %v2160, %v2028
        %v2162 = vadd.f32 %v2161, %v2029
        %v2163 = vadd.f32 %v2162, %v2030
        %v2164 = vadd.f32 %v2163, %v2031
        %v2165 = vadd.f32 %v2164, %v2032
        %v2166 = vadd.f32 %v2165, %v2033
        %v2167 = vadd.f32 %v2166, %v2034
        %v2168 = vadd.f32 %v2167, %v2035
        %v2169 = vadd.f32 %v2168, %v2036
        %v2170 = vadd.f32 %v2169, %v2037
        %v2171 = vadd.f32 %v2170, %v2038
        %v2172 = vadd.f32 %v2171, %v2039
        %v2173 = vrot.slane %v2172, 4
        %v2174 = vadd.f32 %v2172, %v2173
        %v2175 = vrot.slane %v2174, 2
        %v2176 = vadd.f32 %v2174, %v2175
        %v2177 = vrot.slane %v2176, 1
        %v2178 = vadd.f32 %v2176, %v2177
        %v2179 = vadd.f32 %v2040, %v2041
        %v2180 = vadd.f32 %v2179, %v2042
        %v2181 = vadd.f32 %v2180, %v2043
        %v2182 = vadd.f32 %v2181, %v2044
        %v2183 = vadd.f32 %v2182, %v2045
        %v2184 = vadd.f32 %v2183, %v2046
        %v2185 = vadd.f32 %v2184, %v2047
        %v2186 = vadd.f32 %v2185, %v2048
        %v2187 = vadd.f32 %v2186, %v2049
        %v2188 = vadd.f32 %v2187, %v2050
        %v2189 = vadd.f32 %v2188, %v2051
        %v2190 = vadd.f32 %v2189, %v2052
        %v2191 = vadd.f32 %v2190, %v2053
        %v2192 = vadd.f32 %v2191, %v2054
        %v2193 = vadd.f32 %v2192, %v2055
        %v2194 = vrot.slane %v2193, 4
        %v2195 = vadd.f32 %v2193, %v2194
        %v2196 = vrot.slane %v2195, 2
        %v2197 = vadd.f32 %v2195, %v2196
        %v2198 = vrot.slane %v2197, 1
        %v2199 = vadd.f32 %v2197, %v2198
        %v2200 = vadd.f32 %v2056, %v2057
        %v2201 = vadd.f32 %v2200, %v2058
        %v2202 = vadd.f32 %v2201, %v2059
        %v2203 = vadd.f32 %v2202, %v2060
        %v2204 = vadd.f32 %v2203, %v2061
        %v2205 = vadd.f32 %v2204, %v2062
        %v2206 = vadd.f32 %v2205, %v2063
        %v2207 = vadd.f32 %v2206, %v2064
        %v2208 = vadd.f32 %v2207, %v2065
        %v2209 = vadd.f32 %v2208, %v2066
        %v2210 = vadd.f32 %v2209, %v2067
        %v2211 = vadd.f32 %v2210, %v2068
        %v2212 = vadd.f32 %v2211, %v2069
        %v2213 = vadd.f32 %v2212, %v2070
        %v2214 = vadd.f32 %v2213, %v2071
        %v2215 = vrot.slane %v2214, 4
        %v2216 = vadd.f32 %v2214, %v2215
        %v2217 = vrot.slane %v2216, 2
        %v2218 = vadd.f32 %v2216, %v2217
        %v2219 = vrot.slane %v2218, 1
        %v2220 = vadd.f32 %v2218, %v2219
        %v2221 = vadd.f32 %v2072, %v2073
        %v2222 = vadd.f32 %v2221, %v2074
        %v2223 = vadd.f32 %v2222, %v2075
        %v2224 = vadd.f32 %v2223, %v2076
        %v2225 = vadd.f32 %v2224, %v2077
        %v2226 = vadd.f32 %v2225, %v2078
        %v2227 = vadd.f32 %v2226, %v2079
        %v2228 = vadd.f32 %v2227, %v2080
        %v2229 = vadd.f32 %v2228, %v2081
        %v2230 = vadd.f32 %v2229, %v2082
        %v2231 = vadd.f32 %v2230, %v2083
        %v2232 = vadd.f32 %v2231, %v2084
        %v2233 = vadd.f32 %v2232, %v2085
        %v2234 = vadd.f32 %v2233, %v2086
        %v2235 = vadd.f32 %v2234, %v2087
        %v2236 = vrot.slane %v2235, 4
        %v2237 = vadd.f32 %v2235, %v2236
        %v2238 = vrot.slane %v2237, 2
        %v2239 = vadd.f32 %v2237, %v2238
        %v2240 = vrot.slane %v2239, 1
        %v2241 = vadd.f32 %v2239, %v2240
        %v2242 = vadd.f32 %v2088, %v2089
        %v2243 = vadd.f32 %v2242, %v2090
        %v2244 = vadd.f32 %v2243, %v2091
        %v2245 = vadd.f32 %v2244, %v2092
        %v2246 = vadd.f32 %v2245, %v2093
        %v2247 = vadd.f32 %v2246, %v2094
        %v2248 = vadd.f32 %v2247, %v2095
        %v2249 = vadd.f32 %v2248, %v2096
        %v2250 = vadd.f32 %v2249, %v2097
        %v2251 = vadd.f32 %v2250, %v2098
        %v2252 = vadd.f32 %v2251, %v2099
        %v2253 = vadd.f32 %v2252, %v2100
        %v2254 = vadd.f32 %v2253, %v2101
        %v2255 = vadd.f32 %v2254, %v2102
        %v2256 = vadd.f32 %v2255, %v2103
        %v2257 = vrot.slane %v2256, 4
        %v2258 = vadd.f32 %v2256, %v2257
        %v2259 = vrot.slane %v2258, 2
        %v2260 = vadd.f32 %v2258, %v2259
        %v2261 = vrot.slane %v2260, 1
        %v2262 = vadd.f32 %v2260, %v2261
        %v2263 = vadd.f32 %v2104, %v2105
        %v2264 = vadd.f32 %v2263, %v2106
        %v2265 = vadd.f32 %v2264, %v2107
        %v2266 = vadd.f32 %v2265, %v2108
        %v2267 = vadd.f32 %v2266, %v2109
        %v2268 = vadd.f32 %v2267, %v2110
        %v2269 = vadd.f32 %v2268, %v2111
        %v2270 = vadd.f32 %v2269, %v2112
        %v2271 = vadd.f32 %v2270, %v2113
        %v2272 = vadd.f32 %v2271, %v2114
        %v2273 = vadd.f32 %v2272, %v2115
        %v2274 = vadd.f32 %v2273, %v2116
        %v2275 = vadd.f32 %v2274, %v2117
        %v2276 = vadd.f32 %v2275, %v2118
        %v2277 = vadd.f32 %v2276, %v2119
        %v2278 = vrot.slane %v2277, 4
        %v2279 = vadd.f32 %v2277, %v2278
        %v2280 = vrot.slane %v2279, 2
        %v2281 = vadd.f32 %v2279, %v2280
        %v2282 = vrot.slane %v2281, 1
        %v2283 = vadd.f32 %v2281, %v2282
        %v2284 = vadd.f32 %v2120, %v2121
        %v2285 = vadd.f32 %v2284, %v2122
        %v2286 = vadd.f32 %v2285, %v2123
        %v2287 = vadd.f32 %v2286, %v2124
        %v2288 = vadd.f32 %v2287, %v2125
        %v2289 = vadd.f32 %v2288, %v2126
        %v2290 = vadd.f32 %v2289, %v2127
        %v2291 = vadd.f32 %v2290, %v2128
        %v2292 = vadd.f32 %v2291, %v2129
        %v2293 = vadd.f32 %v2292, %v2130
        %v2294 = vadd.f32 %v2293, %v2131
        %v2295 = vadd.f32 %v2294, %v2132
        %v2296 = vadd.f32 %v2295, %v2133
        %v2297 = vadd.f32 %v2296, %v2134
        %v2298 = vadd.f32 %v2297, %v2135
        %v2299 = vrot.slane %v2298, 4
        %v2300 = vadd.f32 %v2298, %v2299
        %v2301 = vrot.slane %v2300, 2
        %v2302 = vadd.f32 %v2300, %v2301
        %v2303 = vrot.slane %v2302, 1
        %v2304 = vadd.f32 %v2302, %v2303
        %vm2313 = vcmask 1041409
        %v2314 = vsel %vm2313, %v2178, %v2157
        %vm2315 = vcmask 1042434
        %v2316 = vsel %vm2315, %v2199, %v2314
        %vm2317 = vcmask 1043459
        %v2318 = vsel %vm2317, %v2220, %v2316
        %vm2319 = vcmask 1044484
        %v2320 = vsel %vm2319, %v2241, %v2318
        %vm2321 = vcmask 1045509
        %v2322 = vsel %vm2321, %v2262, %v2320
        %vm2323 = vcmask 1046534
        %v2324 = vsel %vm2323, %v2283, %v2322
        %vm2325 = vcmask 1047559
        %v2326 = vsel %vm2325, %v2304, %v2324
        %v2328 = vadd.f32 %v2136, %v2326
        %2329 = vst [vmem:[#allocation2] sm:$0xff] %v2328
        %p2330 = scmp.eq.s32.totalorder %s22, 1
        // Predicated region
        $region86: #{tpu_custom_call.1} parent=76 // pred_check
          %p2331 = pneg %p2330
        $region87: #{tpu_custom_call.1} parent=76 // pred_check_branch
          %2333 = sbr.rel (%p2331) target = $region89
        $region88: #{tpu_custom_call.1} parent=76 // pred_region
          %v2334 = vld [vmem:[#allocation2] sm:$0xff]
          %v2335 = vld [vmem:[%s3] sm:$0xff]
          %v2336 = vld [vmem:[%s3 + $0x8] sm:$0xff]
          %v2337 = vld [vmem:[%s3 + $0x10] sm:$0xff]
          %v2338 = vld [vmem:[%s3 + $0x18] sm:$0xff]
          %v2339 = vld [vmem:[%s3 + $0x20] sm:$0xff]
          %v2340 = vld [vmem:[%s3 + $0x28] sm:$0xff]
          %v2341 = vld [vmem:[%s3 + $0x30] sm:$0xff]
          %v2342 = vld [vmem:[%s3 + $0x38] sm:$0xff]
          %v2343 = vld [vmem:[%s3 + $0x40] sm:$0xff]
          %v2344 = vld [vmem:[%s3 + $0x48] sm:$0xff]
          %v2345 = vld [vmem:[%s3 + $0x50] sm:$0xff]
          %v2346 = vld [vmem:[%s3 + $0x58] sm:$0xff]
          %v2347 = vld [vmem:[%s3 + $0x60] sm:$0xff]
          %v2348 = vld [vmem:[%s3 + $0x68] sm:$0xff]
          %v2349 = vld [vmem:[%s3 + $0x70] sm:$0xff]
          %v2350 = vld [vmem:[%s3 + $0x78] sm:$0xff]
          %v2351 = vld [vmem:[%s4] sm:$0x1]
          %v2353 = vlaneseq
          %v2354 = vshrl.u32 %v2353, 7
          %v2355 = vsub.s32 0, %v2354
          %v2356 = vrot.slane %v2351, %v2355
          %2358 = vmatprep.subr.mxu0 0.0
          %2359 = vmatpush1.msra.mxu0 %v2335
          %2360 = vmatprep.subr.mxu0 0.0
          %2361 = vmatpush1.msra.mxu0 %v2336
          %2362 = vmatprep.subr.mxu0 0.0
          %2363 = vmatpush1.msra.mxu0 %v2337
          %2364 = vmatprep.subr.mxu0 0.0
          %2365 = vmatpush1.msra.mxu0 %v2338
          %2366 = vmatprep.subr.mxu0 0.0
          %2367 = vmatpush1.msra.mxu0 %v2339
          %2368 = vmatprep.subr.mxu0 0.0
          %2369 = vmatpush1.msra.mxu0 %v2340
          %2370 = vmatprep.subr.mxu0 0.0
          %2371 = vmatpush1.msra.mxu0 %v2341
          %2372 = vmatprep.subr.mxu0 0.0
          %2373 = vmatpush1.msra.mxu0 %v2342
          %2374 = vmatprep.subr.mxu0 0.0
          %2375 = vmatpush1.msra.mxu0 %v2343
          %2376 = vmatprep.subr.mxu0 0.0
          %2377 = vmatpush1.msra.mxu0 %v2344
          %2378 = vmatprep.subr.mxu0 0.0
          %2379 = vmatpush1.msra.mxu0 %v2345
          %2380 = vmatprep.subr.mxu0 0.0
          %2381 = vmatpush1.msra.mxu0 %v2346
          %2382 = vmatprep.subr.mxu0 0.0
          %2383 = vmatpush1.msra.mxu0 %v2347
          %2384 = vmatprep.subr.mxu0 0.0
          %2385 = vmatpush1.msra.mxu0 %v2348
          %2386 = vmatprep.subr.mxu0 0.0
          %2387 = vmatpush1.msra.mxu0 %v2349
          %2388 = vmatprep.subr.mxu0 0.0
          %2389 = vmatpush1.msra.mxu0 %v2350
          %2390 = vmatprep.subr.mxu0 0.0
          %2391 = vmatpush1.msra.mxu0 0.0
          %2392 = vmatprep.subr.mxu0 0.0
          %2393 = vmatpush1.msra.mxu0 0.0
          %2394 = vmatprep.subr.mxu0 0.0
          %2395 = vmatpush1.msra.mxu0 0.0
          %2396 = vmatprep.subr.mxu0 0.0
          %2397 = vmatpush1.msra.mxu0 0.0
          %2398 = vmatprep.subr.mxu0 0.0
          %2399 = vmatpush1.msra.mxu0 0.0
          %2400 = vmatprep.subr.mxu0 0.0
          %2401 = vmatpush1.msra.mxu0 0.0
          %2402 = vmatprep.subr.mxu0 0.0
          %2403 = vmatpush1.msra.mxu0 0.0
          %2404 = vmatprep.subr.mxu0 0.0
          %2405 = vmatpush1.msra.mxu0 0.0
          %2406 = vmatprep.subr.mxu0 0.0
          %2407 = vmatpush1.msra.mxu0 0.0
          %2408 = vmatprep.subr.mxu0 0.0
          %2409 = vmatpush1.msra.mxu0 0.0
          %2410 = vmatprep.subr.mxu0 0.0
          %2411 = vmatpush1.msra.mxu0 0.0
          %2412 = vmatprep.subr.mxu0 0.0
          %2413 = vmatpush1.msra.mxu0 0.0
          %2414 = vmatprep.subr.mxu0 0.0
          %2415 = vmatpush1.msra.mxu0 0.0
          %2416 = vmatprep.subr.mxu0 0.0
          %2417 = vmatpush1.msra.mxu0 0.0
          %2418 = vmatprep.subr.mxu0 0.0
          %2419 = vmatpush1.msra.mxu0 0.0
          %2420 = vmatprep.subr.mxu0 0.0
          %2421 = vmatpush1.msra.mxu0 0.0
          %2422 = vmatprep.mubr.f32.mxu0 0.0
          %2423 = vmatmul.mubr.f32.gmra.mrb[0].mxu0 %v2334
          %v2424 = vpop.f32.mrb[0].mxu0
          %v2425 = vadd.f32 %v2356, %v2424
          %v2426 = vpop.f32.mrb[0].mxu0
          %2427 = vdwg.mxu0
          %2428 = vst [vmem:[#allocation4] sm:$0xff] %v2425
        $region89: #{tpu_custom_call.1} parent=76 // pred_fallthru
          _
        // Predicated region
        $region90: #{tpu_custom_call.1} parent=76 // pred_check
          %p2429 = pneg %p159
        $region91: #{tpu_custom_call.1} parent=76 // pred_check_branch
          %2431 = sbr.rel (%p2429) target = $region93
        $region92: #{tpu_custom_call.1} parent=76 // pred_region
          %s2433 = ssub.s32 128, 128
          %2434 = vsyncadd [#allocation5], %s2433
          %s2435 = smul.addr %s21, 128
          %s2436 = scalar_lea.hbm %s5, %s2435
          %s2438 = sshll.u32 [#allocation4], 4
          %s2439 = int_to_ptr.vmem [resolvable:$true] %s2438
          %2441 = dma.vmem_to_hbm [thread:$0]  %s2439, 128, %s2436, [#allocation5]
        $region93: #{tpu_custom_call.1} parent=76 // pred_fallthru
          _
        // Predicated region
        $region94: #{tpu_custom_call.1} parent=76 // pred_check
          %p2442 = pneg %p159
        $region95: #{tpu_custom_call.1} parent=76 // pred_check_branch
          %2444 = sbr.rel (%p2442) target = $region97
        $region96: #{tpu_custom_call.1} parent=76 // pred_region
          %2445 = dma.done [#allocation5], 128
        $region97: #{tpu_custom_call.1} parent=76 // pred_fallthru
          _
      $region77: #{tpu_custom_call.1} parent=5 // pred_fallthru
        _
      %p2446 = scmp.le.s32.totalorder 2, %s12
      // Predicated region
      $region98: #{tpu_custom_call.1} parent=5 // pred_check
        %p2447 = pneg %p2446
      $region99: #{tpu_custom_call.1} parent=5 // pred_check_branch
        %2449 = sbr.rel (%p2447) target = $region101
      $region100: #{tpu_custom_call.1} parent=5 // pred_region
        %s2450 = ssub.s32 %s12, 2
      $region101: #{tpu_custom_call.1} parent=5 // pred_fallthru
        _
    $region6: #{tpu_custom_call.1} parent=1 // loop_footer
      %s16 = sadd.s32 1, %s12
    $region7: #{tpu_custom_call.1} parent=1 // loop_footer_branch
      %11 = sbr.rel target = $region3
    $region8: #{tpu_custom_call.1} parent=1 // loop_exit
      _
    %2451 = vsyncpa [#allocation5], 1
    %s2452 = scalar_lea.sflag [#allocation5], 1
    %2453 = vsyncpa %s2452, 1

</llo_original>
